<compile_context>
chip_gen: v7x
topology: tpu7x:2x2x1
jax: 0.10.0
libtpu: 0.0.40
codegen_flags: <defaults>
</compile_context>

<pallas_src>
import math
from functools import partial

import jax
import jax.numpy as jnp
from jax.experimental import pallas as pl
from jax.experimental.pallas import tpu as pltpu


def _round_up(n, m):
    return ((n + m - 1) // m) * m


def _device_kind():
    try:
        return jax.devices()[0].device_kind.lower()
    except Exception:
        return ""


def _is_v5_chip():
    return "v5" in _device_kind()


def _vmem_capacity_bytes():
    try:
        return int(pltpu.get_tpu_info().vmem_capacity_bytes)
    except Exception:
        pass
    kind = _device_kind()
    if ("v5" in kind) or ("v6" in kind):
        return 128 * 1024 * 1024
    return 64 * 1024 * 1024  # v7x / unknown: be conservative


# ----------------------------------------------------------------------------
# Fused Resnet1D stack kernel.
#   x_hbm  : (B, Lr + 2*Hpad, Cp)  padded input, raw HBM (manual DMA)
#   w1_ref : (D, 3*Cp, Csp) [im2col]  or  (D, 3, Cp, Csp)   (compute_dtype)
#   b1_ref : (D, 1, Csp)  f32
#   w2_ref : (D, Csp, Cp) (compute_dtype, pre-scaled by res_scale)
#   b2_ref : (D, 1, Cp)   f32           (pre-scaled by res_scale)
#   o_ref  : (1, TL, Cp)  f32 output tile
#   xbuf   : (2, TLp, Cp) f32 double-buffered halo'd input windows
#   sem    : (2,) DMA semaphores
# ----------------------------------------------------------------------------
def _resnet1d_stack_kernel(x_hbm, w1_ref, b1_ref, w2_ref, b2_ref, o_ref,
                           xbuf, sem, *, dilations, L, TL, Hpad, nLt,
                           use_im2col, compute_dtype):
    b = pl.program_id(0)
    j = pl.program_id(1)
    TLp = TL + 2 * Hpad
    cur = jax.lax.rem(j, 2)

    def copy(step, slot):
        # Clamp keeps every constructed descriptor in-bounds (the clamped case
        # only occurs under a false pl.when and never actually runs).
        step_c = jnp.minimum(step, nLt - 1)
        start = pl.multiple_of(step_c * TL, 8)
        return pltpu.make_async_copy(
            x_hbm.at[b, pl.ds(start, TLp), :], xbuf.at[slot], sem.at[slot])

    # Per-batch-row prefetch chain.  The L-tile axis is "arbitrary", so each
    # core iterates j = 0..nLt-1 in order for its assigned b values and the
    # chain is megacore-safe.
    @pl.when(j == 0)
    def _():
        copy(j, cur).start()                 # prime this row's first window

    if nLt > 1:
        @pl.when(j + 1 < nLt)
        def _():
            copy(j + 1, 1 - cur).start()     # prefetch next window now

    copy(j, cur).wait()                      # current window is ready
    x_cur = xbuf[cur]                        # (TLp, Cp) f32

    # Global (unpadded) row index of each buffer row -> "same"-padding mask.
    rows = (jax.lax.broadcasted_iota(jnp.int32, (TLp, x_cur.shape[1]), 0)
            + (j * TL - Hpad))
    valid = jnp.logical_and(rows >= 0, rows < L)

    cdt = compute_dtype
    f32 = jnp.float32
    # TODO(synk): for very deep stacks (n_depth >= 16) stream weights via an
    # extra "arbitrary" depth grid axis instead of fully unrolling this loop.
    for l, d in enumerate(dilations):
        h = jnp.maximum(x_cur, 0.0)                    # ReLU; invalid rows stay 0
        hm = pltpu.roll(h, d, axis=0)                  # h[i - d]  (XLU rotate)
        hp = pltpu.roll(h, TLp - d, axis=0)            # h[i + d]
        if use_im2col:
            hcat = jnp.concatenate(
                [hm.astype(cdt), h.astype(cdt), hp.astype(cdt)], axis=1)
            y1 = jnp.dot(hcat, w1_ref[l], preferred_element_type=f32)
        else:
            y1 = jnp.dot(hm.astype(cdt), w1_ref[l, 0], preferred_element_type=f32)
            y1 = y1 + jnp.dot(h.astype(cdt), w1_ref[l, 1],
                              preferred_element_type=f32)
            y1 = y1 + jnp.dot(hp.astype(cdt), w1_ref[l, 2],
                              preferred_element_type=f32)
        y1 = y1 + b1_ref[l]
        h2 = jnp.maximum(y1, 0.0).astype(cdt)
        y2 = jnp.dot(h2, w2_ref[l], preferred_element_type=f32) + b2_ref[l]
        # w2/b2 already carry res_scale.  Masking y2 keeps out-of-range rows at
        # exactly zero, so they remain correct "same" zero padding for the next
        # layer.  Roll-wrap garbage at the buffer edges is never consumed
        # because Hpad >= sum(dilations).
        x_cur = x_cur + jnp.where(valid, y2, 0.0)

    # Final layer result goes straight to the output tile (interior rows only).
    o_ref[0] = x_cur[Hpad:Hpad + TL, :].astype(o_ref.dtype)


def resnet1d_forward(x_ncl, params, *, tile_l=None, compute_dtype=jnp.bfloat16):
    """x_ncl: (B, C, L) as in PyTorch.  Returns (B, C, L) float32."""
    B, C, L = x_ncl.shape
    dilations = tuple(int(p["dilation"]) for p in params)
    res_scales = tuple(float(p["res_scale"]) for p in params)
    C_state = int(params[0]["w1"].shape[2])
    D = len(params)

    Cp = _round_up(C, 128)                    # lane-dense channel padding
    Csp = _round_up(C_state, 128)
    # im2col (K = 3*Cp contraction) only helps the 256-deep MXUs of v6e/v7x.
    use_im2col = (Cp <= 128) and not _is_v5_chip()

    Hpad = _round_up(sum(dilations), 8)       # halo, sublane aligned
    assert Hpad >= sum(dilations), "halo must cover the total dilation reach"

    # --- VMEM-aware tile sizing ---------------------------------------------
    cap = _vmem_capacity_bytes()
    budget = int(0.80 * cap)                  # leave headroom for compiler scratch
    cdt_size = jnp.dtype(compute_dtype).itemsize
    w_bytes = D * ((3 * Cp * Csp + Csp * Cp) * cdt_size + (Csp + Cp) * 4)

    def footprint(tl):
        tlp = tl + 2 * Hpad
        inbuf = 2 * tlp * Cp * 4              # manual double-buffered input windows
        outbuf = 2 * tl * Cp * 4              # Pallas double-buffered output block
        tmp = tlp * (6 * max(Cp, Csp) * 4 + (3 * Cp + 2 * Csp) * cdt_size)
        return 2 * w_bytes + inbuf + outbuf + tmp

    Lr8 = _round_up(L, 8)
    if tile_l is None:
        tile_l = 2048 if cap >= 96 * 1024 * 1024 else 1024
    TL = min(_round_up(tile_l, 8), Lr8)
    while TL > 8 and footprint(TL) > budget:
        TL = max(8, _round_up(TL // 2, 8))

    Lr = _round_up(L, TL)
    nLt = Lr // TL
    TLp = TL + 2 * Hpad
    vmem_limit = int(budget)

    # NCL -> NLC once; a single pad for the whole stack (halo + tile round-up,
    # channel pad up to a lane multiple).
    x_nlc = jnp.transpose(x_ncl, (0, 2, 1)).astype(jnp.float32)
    x_pad = jnp.pad(x_nlc, ((0, 0), (Hpad, Hpad + Lr - L), (0, Cp - C)))

    # Stack / pad / cast the per-layer weights.  res_scale is folded into
    # w2/b2 so the kernel's residual update is a plain add.
    w1_l, b1_l, w2_l, b2_l = [], [], [], []
    for p, rs in zip(params, res_scales):
        w1 = jnp.pad(p["w1"], ((0, 0), (0, Cp - C), (0, Csp - C_state)))
        if use_im2col:
            w1 = w1.reshape(3 * Cp, Csp)      # matches concat([h[-d], h, h[+d]])
        w1_l.append(w1.astype(compute_dtype))
        b1_l.append(jnp.pad(p["b1"], ((0, 0), (0, Csp - C_state))).astype(jnp.float32))
        w2_l.append(jnp.pad(rs * p["w2"],
                            ((0, Csp - C_state), (0, Cp - C))).astype(compute_dtype))
        b2_l.append(jnp.pad(rs * p["b2"], ((0, 0), (0, Cp - C))).astype(jnp.float32))
    w1_all = jnp.stack(w1_l)
    b1_all = jnp.stack(b1_l)
    w2_all = jnp.stack(w2_l)
    b2_all = jnp.stack(b2_l)

    kernel = partial(_resnet1d_stack_kernel, dilations=dilations, L=L, TL=TL,
                     Hpad=Hpad, nLt=nLt, use_im2col=use_im2col,
                     compute_dtype=compute_dtype)

    nd_w1 = w1_all.ndim
    out = pl.pallas_call(
        kernel,
        out_shape=jax.ShapeDtypeStruct((B, Lr, Cp), jnp.float32),
        grid_spec=pltpu.PrefetchScalarGridSpec(
            num_scalar_prefetch=0,
            grid=(B, nLt),
            in_specs=[
                pl.BlockSpec(memory_space=pl.ANY),            # x: raw HBM, manual DMA
                pl.BlockSpec(w1_all.shape, lambda b, j, nd=nd_w1: (0,) * nd),
                pl.BlockSpec(b1_all.shape, lambda b, j: (0, 0, 0)),
                pl.BlockSpec(w2_all.shape, lambda b, j: (0, 0, 0)),
                pl.BlockSpec(b2_all.shape, lambda b, j: (0, 0, 0)),
            ],
            out_specs=pl.BlockSpec((1, TL, Cp), lambda b, j: (b, j, 0)),
            scratch_shapes=[
                pltpu.VMEM((2, TLp, Cp), jnp.float32),        # double-buffered windows
                pltpu.SemaphoreType.DMA((2,)),
            ],
        ),
        compiler_params=pltpu.CompilerParams(
            # L-tile axis must run in order on one core for the prefetch chain;
            # the batch axis is sharded across the v7x megacore.
            dimension_semantics=("parallel", "arbitrary"),
            vmem_limit_bytes=vmem_limit),
    )(x_pad, w1_all, b1_all, w2_all, b2_all)

    return jnp.transpose(out[:, :L, :C], (0, 2, 1))


# ----------------------------------------------------------------------------
# Parameter construction (deterministic, mirrors nn.Conv1d default init bounds)
# ----------------------------------------------------------------------------
def init_resnet1d_params(key, n_in, n_depth, m_conv=1.0,
                         dilation_growth_rate=1, dilation_cycle=None,
                         res_scale=False, reverse_dilation=False):
    def _get_depth(depth):
        return depth if dilation_cycle is None else depth % dilation_cycle

    rs = 1.0 if not res_scale else 1.0 / math.sqrt(n_depth)
    n_state = int(m_conv * n_in)

    params = []
    for depth in range(n_depth):
        d = dilation_growth_rate ** _get_depth(depth)
        key, k1, k2, k3, k4 = jax.random.split(key, 5)
        bound1 = 1.0 / math.sqrt(n_in * 3)      # conv1: fan_in = n_in * kernel(3)
        bound2 = 1.0 / math.sqrt(n_state * 1)   # conv2: fan_in = n_state * 1
        w1 = jax.random.uniform(k1, (3, n_in, n_state), jnp.float32,
                                -bound1, bound1)
        b1 = jax.random.uniform(k2, (1, n_state), jnp.float32, -bound1, bound1)
        w2 = jax.random.uniform(k3, (n_state, n_in), jnp.float32,
                                -bound2, bound2)
        b2 = jax.random.uniform(k4, (1, n_in), jnp.float32, -bound2, bound2)
        params.append(dict(w1=w1, b1=b1, w2=w2, b2=b2, dilation=d, res_scale=rs))

    if reverse_dilation:
        params = params[::-1]
    return params


# ----------------------------------------------------------------------------
# Pure-JAX reference (numerical sanity check)
# ----------------------------------------------------------------------------
def _ref_block(x_nlc, w1, b1, w2, b2, d, rs):
    L = x_nlc.shape[1]
    h = jnp.maximum(x_nlc, 0.0)
    hp = jnp.pad(h, ((0, 0), (d, d), (0, 0)))
    y1 = sum(jnp.einsum("blc,cs->bls", hp[:, k * d:k * d + L, :], w1[k])
             for k in range(3)) + b1
    h2 = jnp.maximum(y1, 0.0)
    y2 = jnp.einsum("bls,sc->blc", h2, w2) + b2
    return x_nlc + rs * y2


def _ref_forward(x_ncl, params):
    x = jnp.transpose(x_ncl, (0, 2, 1))
    for p in params:
        x = _ref_block(x, p["w1"], p["b1"], p["w2"], p["b2"],
                       p["dilation"], p["res_scale"])
    return jnp.transpose(x, (0, 2, 1))


if __name__ == "__main__":
    # Config 1: Resnet1D(n_in=4, n_depth=3, dilation_growth_rate=2)
    B, C, L = 2, 4, 16
    n_depth = 3

    key = jax.random.PRNGKey(0)
    key, kx = jax.random.split(key)
    x = jax.random.normal(kx, (B, C, L), dtype=jnp.float32)   # NCL like PyTorch

    params = init_resnet1d_params(key, n_in=C, n_depth=n_depth, m_conv=1.0,
                                  dilation_growth_rate=2, dilation_cycle=None,
                                  res_scale=False, reverse_dilation=False)
    ref = jax.block_until_ready(_ref_forward(x, params))

    # 1) exact path (f32 matmuls) vs. the pure-JAX reference.
    out_f32 = jax.block_until_ready(
        resnet1d_forward(x, params, compute_dtype=jnp.float32))
    assert out_f32.shape == (B, C, L)
    assert jnp.allclose(out_f32, ref, atol=1e-4, rtol=1e-4), "f32 mismatch"

    # 2) default fast path (bf16 MXU inputs, f32 accumulation / residual).
    out_bf16 = jax.block_until_ready(resnet1d_forward(x, params))
    assert out_bf16.shape == (B, C, L)
    assert jnp.allclose(out_bf16, ref, atol=5e-2, rtol=5e-2), "bf16 mismatch"

    # 3) multi-L-tile path (halo + masking + prefetch chain across tiles),
    #    reversed dilations and res_scale enabled.
    B2, C2, L2, depth2 = 2, 4, 80, 4
    key, kx2, kp2 = jax.random.split(key, 3)
    x2 = jax.random.normal(kx2, (B2, C2, L2), dtype=jnp.float32)
    params2 = init_resnet1d_params(kp2, n_in=C2, n_depth=depth2, m_conv=1.0,
                                   dilation_growth_rate=2, dilation_cycle=None,
                                   res_scale=True, reverse_dilation=True)
    ref2 = jax.block_until_ready(_ref_forward(x2, params2))
    out2 = jax.block_until_ready(
        resnet1d_forward(x2, params2, tile_l=32, compute_dtype=jnp.float32))
    assert out2.shape == (B2, C2, L2)
    assert jnp.allclose(out2, ref2, atol=1e-4, rtol=1e-4), "tiled mismatch"

    print("KERNEL_OK")
</pallas_src>

<mosaic_0001>
module attributes {stable_mosaic.version = 11 : i64} {
  func.func @_resnet1d_stack_kernel(%arg0: i32, %arg1: i32, %arg2: memref<2x32x128xf32, #tpu.memory_space<any>>, %arg3: memref<3x384x128xf32, #tpu.memory_space<vmem>>, %arg4: memref<3x1x128xf32, #tpu.memory_space<vmem>>, %arg5: memref<3x128x128xf32, #tpu.memory_space<vmem>>, %arg6: memref<3x1x128xf32, #tpu.memory_space<vmem>>, %arg7: memref<1x16x128xf32, #tpu.memory_space<vmem>>, %arg8: memref<2x32x128xf32, #tpu.memory_space<vmem>>, %arg9: memref<2x!tpu.dma_semaphore, #tpu.memory_space<semaphore_mem>>) attributes {dimension_semantics = [#tpu.dimension_semantics<parallel>, #tpu.dimension_semantics<arbitrary>], iteration_bounds = array<i64: 2, 1>, scalar_prefetch = 0 : i64, scratch_operands = 2 : i64, tpu.core_type = #tpu.core_type<tc>, window_params = [{}, {pipeline_mode = #tpu.pipeline_mode<synchronous>, transform_indices = @transform_1, window_bounds = array<i64: 3, 384, 128>}, {pipeline_mode = #tpu.pipeline_mode<synchronous>, transform_indices = @transform_2, window_bounds = array<i64: 3, 1, 128>}, {pipeline_mode = #tpu.pipeline_mode<synchronous>, transform_indices = @transform_3, window_bounds = array<i64: 3, 128, 128>}, {pipeline_mode = #tpu.pipeline_mode<synchronous>, transform_indices = @transform_4, window_bounds = array<i64: 3, 1, 128>}, {transform_indices = @transform_5, window_bounds = array<i64: 1, 16, 128>}]} {
    %c2_i32 = arith.constant 2 : i32
    %0 = arith.remsi %arg1, %c2_i32 : i32
    %c0_i32 = arith.constant 0 : i32
    %1 = arith.cmpi eq, %arg1, %c0_i32 : i32
    %2 = arith.extui %1 : i1 to i32
    %c0_i32_0 = arith.constant 0 : i32
    %3 = arith.cmpi ne, %2, %c0_i32_0 : i32
    scf.if %3 {
      %c0_i32_61 = arith.constant 0 : i32
      %102 = arith.minsi %arg1, %c0_i32_61 : i32
      %c16_i32_62 = arith.constant 16 : i32
      %103 = arith.muli %102, %c16_i32_62 : i32
      %104 = tpu.assume_multiple %103, 8 : i32
      %c0_i32_63 = arith.constant 0 : i32
      %105 = tpu.memref_slice %arg2[%arg0, %104, %c0_i32_63] : memref<2x32x128xf32, #tpu.memory_space<any>> -> memref<1x32x128xf32, #tpu.memory_space<any>>
      %106 = tpu.memref_squeeze %105 : memref<1x32x128xf32, #tpu.memory_space<any>> -> memref<32x128xf32, #tpu.memory_space<any>>
      %c0_i32_64 = arith.constant 0 : i32
      %c0_i32_65 = arith.constant 0 : i32
      %107 = tpu.memref_slice %arg8[%0, %c0_i32_64, %c0_i32_65] : memref<2x32x128xf32, #tpu.memory_space<vmem>> -> memref<1x32x128xf32, #tpu.memory_space<vmem>>
      %108 = tpu.memref_squeeze %107 : memref<1x32x128xf32, #tpu.memory_space<vmem>> -> memref<32x128xf32, #tpu.memory_space<vmem>>
      %109 = tpu.memref_slice %arg9[%0] : memref<2x!tpu.dma_semaphore, #tpu.memory_space<semaphore_mem>> -> memref<1x!tpu.dma_semaphore, #tpu.memory_space<semaphore_mem>>
      %110 = tpu.memref_squeeze %109 : memref<1x!tpu.dma_semaphore, #tpu.memory_space<semaphore_mem>> -> memref<!tpu.dma_semaphore, #tpu.memory_space<semaphore_mem>>
      tpu.enqueue_dma source(%106 : memref<32x128xf32, #tpu.memory_space<any>>) target(%108 : memref<32x128xf32, #tpu.memory_space<vmem>>) target_semaphore(%110 : memref<!tpu.dma_semaphore, #tpu.memory_space<semaphore_mem>>)
    } else {
    }
    %c0_i32_1 = arith.constant 0 : i32
    %4 = arith.minsi %arg1, %c0_i32_1 : i32
    %c16_i32 = arith.constant 16 : i32
    %5 = arith.muli %4, %c16_i32 : i32
    %6 = tpu.assume_multiple %5, 8 : i32
    %c0_i32_2 = arith.constant 0 : i32
    %7 = tpu.memref_slice %arg2[%arg0, %6, %c0_i32_2] : memref<2x32x128xf32, #tpu.memory_space<any>> -> memref<1x32x128xf32, #tpu.memory_space<any>>
    %8 = tpu.memref_squeeze %7 : memref<1x32x128xf32, #tpu.memory_space<any>> -> memref<32x128xf32, #tpu.memory_space<any>>
    %c0_i32_3 = arith.constant 0 : i32
    %c0_i32_4 = arith.constant 0 : i32
    %9 = tpu.memref_slice %arg8[%0, %c0_i32_3, %c0_i32_4] : memref<2x32x128xf32, #tpu.memory_space<vmem>> -> memref<1x32x128xf32, #tpu.memory_space<vmem>>
    %10 = tpu.memref_squeeze %9 : memref<1x32x128xf32, #tpu.memory_space<vmem>> -> memref<32x128xf32, #tpu.memory_space<vmem>>
    %11 = tpu.memref_slice %arg9[%0] : memref<2x!tpu.dma_semaphore, #tpu.memory_space<semaphore_mem>> -> memref<1x!tpu.dma_semaphore, #tpu.memory_space<semaphore_mem>>
    %12 = tpu.memref_squeeze %11 : memref<1x!tpu.dma_semaphore, #tpu.memory_space<semaphore_mem>> -> memref<!tpu.dma_semaphore, #tpu.memory_space<semaphore_mem>>
    tpu.wait_dma2 semaphore(%12 : memref<!tpu.dma_semaphore, #tpu.memory_space<semaphore_mem>>) src(%8 : memref<32x128xf32, #tpu.memory_space<any>>) dst(%10 : memref<32x128xf32, #tpu.memory_space<vmem>>)
    %13 = arith.index_cast %0 : i32 to index
    %c0 = arith.constant 0 : index
    %c0_5 = arith.constant 0 : index
    %14 = vector.load %arg8[%13, %c0, %c0_5] : memref<2x32x128xf32, #tpu.memory_space<vmem>>, vector<1x32x128xf32>
    %15 = vector.shape_cast %14 : vector<1x32x128xf32> to vector<32x128xf32>
    %16 = tpu.iota {dimensions = array<i32: 0>} : vector<32x128xi32>
    %c16_i32_6 = arith.constant 16 : i32
    %17 = arith.muli %arg1, %c16_i32_6 : i32
    %c8_i32 = arith.constant 8 : i32
    %18 = arith.subi %17, %c8_i32 : i32
    %19 = vector.broadcast %18 : i32 to vector<32x128xi32>
    %20 = arith.addi %16, %19 : vector<32x128xi32>
    %c0_i32_7 = arith.constant 0 : i32
    %21 = vector.broadcast %c0_i32_7 : i32 to vector<32x128xi32>
    %22 = arith.cmpi sge, %20, %21 : vector<32x128xi32>
    %c16_i32_8 = arith.constant 16 : i32
    %23 = vector.broadcast %c16_i32_8 : i32 to vector<32x128xi32>
    %24 = arith.cmpi slt, %20, %23 : vector<32x128xi32>
    %25 = arith.andi %22, %24 : vector<32x128xi1>
    %cst = arith.constant 0.000000e+00 : f32
    %26 = vector.broadcast %cst : f32 to vector<32x128xf32>
    %27 = arith.maximumf %15, %26 : vector<32x128xf32>
    %c1_i32 = arith.constant 1 : i32
    %28 = tpu.dynamic_rotate %27 by %c1_i32 dim 0 : vector<32x128xf32>, i32 -> vector<32x128xf32>
    %c31_i32 = arith.constant 31 : i32
    %29 = tpu.dynamic_rotate %27 by %c31_i32 dim 0 : vector<32x128xf32>, i32 -> vector<32x128xf32>
    %30 = tpu.concatenate %28, %27, %29 in 1 : vector<32x128xf32>, vector<32x128xf32>, vector<32x128xf32> -> vector<32x384xf32>
    %c0_9 = arith.constant 0 : index
    %c0_10 = arith.constant 0 : index
    %c0_11 = arith.constant 0 : index
    %31 = vector.load %arg3[%c0_9, %c0_10, %c0_11] : memref<3x384x128xf32, #tpu.memory_space<vmem>>, vector<1x384x128xf32>
    %32 = vector.shape_cast %31 : vector<1x384x128xf32> to vector<384x128xf32>
    %cst_12 = arith.constant dense<0.000000e+00> : vector<32x128xf32>
    %33 = tpu.matmul %30, %32, %cst_12 {dimension_numbers = #tpu.dot_dimension_numbers<[1], [0], [0], [1], [0, 0, 1, 1], [], []>} : vector<32x384xf32>, vector<384x128xf32>, vector<32x128xf32> -> vector<32x128xf32>
    %c0_13 = arith.constant 0 : index
    %c0_14 = arith.constant 0 : index
    %c0_15 = arith.constant 0 : index
    %34 = vector.load %arg4[%c0_13, %c0_14, %c0_15] : memref<3x1x128xf32, #tpu.memory_space<vmem>>, vector<1x1x128xf32>
    %35 = vector.shape_cast %34 : vector<1x1x128xf32> to vector<1x128xf32>
    %36 = vector.broadcast %35 : vector<1x128xf32> to vector<32x128xf32>
    %37 = arith.addf %33, %36 : vector<32x128xf32>
    %cst_16 = arith.constant 0.000000e+00 : f32
    %38 = vector.broadcast %cst_16 : f32 to vector<32x128xf32>
    %39 = arith.maximumf %37, %38 : vector<32x128xf32>
    %c0_17 = arith.constant 0 : index
    %c0_18 = arith.constant 0 : index
    %c0_19 = arith.constant 0 : index
    %40 = vector.load %arg5[%c0_17, %c0_18, %c0_19] : memref<3x128x128xf32, #tpu.memory_space<vmem>>, vector<1x128x128xf32>
    %41 = vector.shape_cast %40 : vector<1x128x128xf32> to vector<128x128xf32>
    %cst_20 = arith.constant dense<0.000000e+00> : vector<32x128xf32>
    %42 = tpu.matmul %39, %41, %cst_20 {dimension_numbers = #tpu.dot_dimension_numbers<[1], [0], [0], [1], [0, 0, 1, 1], [], []>} : vector<32x128xf32>, vector<128x128xf32>, vector<32x128xf32> -> vector<32x128xf32>
    %c0_21 = arith.constant 0 : index
    %c0_22 = arith.constant 0 : index
    %c0_23 = arith.constant 0 : index
    %43 = vector.load %arg6[%c0_21, %c0_22, %c0_23] : memref<3x1x128xf32, #tpu.memory_space<vmem>>, vector<1x1x128xf32>
    %44 = vector.shape_cast %43 : vector<1x1x128xf32> to vector<1x128xf32>
    %45 = vector.broadcast %44 : vector<1x128xf32> to vector<32x128xf32>
    %46 = arith.addf %42, %45 : vector<32x128xf32>
    %cst_24 = arith.constant 0.000000e+00 : f32
    %47 = vector.broadcast %cst_24 : f32 to vector<32x128xf32>
    %48 = arith.select %25, %46, %47 : vector<32x128xi1>, vector<32x128xf32>
    %49 = arith.addf %15, %48 : vector<32x128xf32>
    %cst_25 = arith.constant 0.000000e+00 : f32
    %50 = vector.broadcast %cst_25 : f32 to vector<32x128xf32>
    %51 = arith.maximumf %49, %50 : vector<32x128xf32>
    %c2_i32_26 = arith.constant 2 : i32
    %52 = tpu.dynamic_rotate %51 by %c2_i32_26 dim 0 : vector<32x128xf32>, i32 -> vector<32x128xf32>
    %c30_i32 = arith.constant 30 : i32
    %53 = tpu.dynamic_rotate %51 by %c30_i32 dim 0 : vector<32x128xf32>, i32 -> vector<32x128xf32>
    %54 = tpu.concatenate %52, %51, %53 in 1 : vector<32x128xf32>, vector<32x128xf32>, vector<32x128xf32> -> vector<32x384xf32>
    %c1 = arith.constant 1 : index
    %c0_27 = arith.constant 0 : index
    %c0_28 = arith.constant 0 : index
    %55 = vector.load %arg3[%c1, %c0_27, %c0_28] : memref<3x384x128xf32, #tpu.memory_space<vmem>>, vector<1x384x128xf32>
    %56 = vector.shape_cast %55 : vector<1x384x128xf32> to vector<384x128xf32>
    %cst_29 = arith.constant dense<0.000000e+00> : vector<32x128xf32>
    %57 = tpu.matmul %54, %56, %cst_29 {dimension_numbers = #tpu.dot_dimension_numbers<[1], [0], [0], [1], [0, 0, 1, 1], [], []>} : vector<32x384xf32>, vector<384x128xf32>, vector<32x128xf32> -> vector<32x128xf32>
    %c1_30 = arith.constant 1 : index
    %c0_31 = arith.constant 0 : index
    %c0_32 = arith.constant 0 : index
    %58 = vector.load %arg4[%c1_30, %c0_31, %c0_32] : memref<3x1x128xf32, #tpu.memory_space<vmem>>, vector<1x1x128xf32>
    %59 = vector.shape_cast %58 : vector<1x1x128xf32> to vector<1x128xf32>
    %60 = vector.broadcast %59 : vector<1x128xf32> to vector<32x128xf32>
    %61 = arith.addf %57, %60 : vector<32x128xf32>
    %cst_33 = arith.constant 0.000000e+00 : f32
    %62 = vector.broadcast %cst_33 : f32 to vector<32x128xf32>
    %63 = arith.maximumf %61, %62 : vector<32x128xf32>
    %c1_34 = arith.constant 1 : index
    %c0_35 = arith.constant 0 : index
    %c0_36 = arith.constant 0 : index
    %64 = vector.load %arg5[%c1_34, %c0_35, %c0_36] : memref<3x128x128xf32, #tpu.memory_space<vmem>>, vector<1x128x128xf32>
    %65 = vector.shape_cast %64 : vector<1x128x128xf32> to vector<128x128xf32>
    %cst_37 = arith.constant dense<0.000000e+00> : vector<32x128xf32>
    %66 = tpu.matmul %63, %65, %cst_37 {dimension_numbers = #tpu.dot_dimension_numbers<[1], [0], [0], [1], [0, 0, 1, 1], [], []>} : vector<32x128xf32>, vector<128x128xf32>, vector<32x128xf32> -> vector<32x128xf32>
    %c1_38 = arith.constant 1 : index
    %c0_39 = arith.constant 0 : index
    %c0_40 = arith.constant 0 : index
    %67 = vector.load %arg6[%c1_38, %c0_39, %c0_40] : memref<3x1x128xf32, #tpu.memory_space<vmem>>, vector<1x1x128xf32>
    %68 = vector.shape_cast %67 : vector<1x1x128xf32> to vector<1x128xf32>
    %69 = vector.broadcast %68 : vector<1x128xf32> to vector<32x128xf32>
    %70 = arith.addf %66, %69 : vector<32x128xf32>
    %cst_41 = arith.constant 0.000000e+00 : f32
    %71 = vector.broadcast %cst_41 : f32 to vector<32x128xf32>
    %72 = arith.select %25, %70, %71 : vector<32x128xi1>, vector<32x128xf32>
    %73 = arith.addf %49, %72 : vector<32x128xf32>
    %cst_42 = arith.constant 0.000000e+00 : f32
    %74 = vector.broadcast %cst_42 : f32 to vector<32x128xf32>
    %75 = arith.maximumf %73, %74 : vector<32x128xf32>
    %c4_i32 = arith.constant 4 : i32
    %76 = tpu.dynamic_rotate %75 by %c4_i32 dim 0 : vector<32x128xf32>, i32 -> vector<32x128xf32>
    %c28_i32 = arith.constant 28 : i32
    %77 = tpu.dynamic_rotate %75 by %c28_i32 dim 0 : vector<32x128xf32>, i32 -> vector<32x128xf32>
    %78 = tpu.concatenate %76, %75, %77 in 1 : vector<32x128xf32>, vector<32x128xf32>, vector<32x128xf32> -> vector<32x384xf32>
    %c2 = arith.constant 2 : index
    %c0_43 = arith.constant 0 : index
    %c0_44 = arith.constant 0 : index
    %79 = vector.load %arg3[%c2, %c0_43, %c0_44] : memref<3x384x128xf32, #tpu.memory_space<vmem>>, vector<1x384x128xf32>
    %80 = vector.shape_cast %79 : vector<1x384x128xf32> to vector<384x128xf32>
    %cst_45 = arith.constant dense<0.000000e+00> : vector<32x128xf32>
    %81 = tpu.matmul %78, %80, %cst_45 {dimension_numbers = #tpu.dot_dimension_numbers<[1], [0], [0], [1], [0, 0, 1, 1], [], []>} : vector<32x384xf32>, vector<384x128xf32>, vector<32x128xf32> -> vector<32x128xf32>
    %c2_46 = arith.constant 2 : index
    %c0_47 = arith.constant 0 : index
    %c0_48 = arith.constant 0 : index
    %82 = vector.load %arg4[%c2_46, %c0_47, %c0_48] : memref<3x1x128xf32, #tpu.memory_space<vmem>>, vector<1x1x128xf32>
    %83 = vector.shape_cast %82 : vector<1x1x128xf32> to vector<1x128xf32>
    %84 = vector.broadcast %83 : vector<1x128xf32> to vector<32x128xf32>
    %85 = arith.addf %81, %84 : vector<32x128xf32>
    %cst_49 = arith.constant 0.000000e+00 : f32
    %86 = vector.broadcast %cst_49 : f32 to vector<32x128xf32>
    %87 = arith.maximumf %85, %86 : vector<32x128xf32>
    %c2_50 = arith.constant 2 : index
    %c0_51 = arith.constant 0 : index
    %c0_52 = arith.constant 0 : index
    %88 = vector.load %arg5[%c2_50, %c0_51, %c0_52] : memref<3x128x128xf32, #tpu.memory_space<vmem>>, vector<1x128x128xf32>
    %89 = vector.shape_cast %88 : vector<1x128x128xf32> to vector<128x128xf32>
    %cst_53 = arith.constant dense<0.000000e+00> : vector<32x128xf32>
    %90 = tpu.matmul %87, %89, %cst_53 {dimension_numbers = #tpu.dot_dimension_numbers<[1], [0], [0], [1], [0, 0, 1, 1], [], []>} : vector<32x128xf32>, vector<128x128xf32>, vector<32x128xf32> -> vector<32x128xf32>
    %c2_54 = arith.constant 2 : index
    %c0_55 = arith.constant 0 : index
    %c0_56 = arith.constant 0 : index
    %91 = vector.load %arg6[%c2_54, %c0_55, %c0_56] : memref<3x1x128xf32, #tpu.memory_space<vmem>>, vector<1x1x128xf32>
    %92 = vector.shape_cast %91 : vector<1x1x128xf32> to vector<1x128xf32>
    %93 = vector.broadcast %92 : vector<1x128xf32> to vector<32x128xf32>
    %94 = arith.addf %90, %93 : vector<32x128xf32>
    %cst_57 = arith.constant 0.000000e+00 : f32
    %95 = vector.broadcast %cst_57 : f32 to vector<32x128xf32>
    %96 = arith.select %25, %94, %95 : vector<32x128xi1>, vector<32x128xf32>
    %97 = arith.addf %73, %96 : vector<32x128xf32>
    %98 = vector.extract_strided_slice %97 {offsets = [8, 0], sizes = [16, 128], strides = [1, 1]} : vector<32x128xf32> to vector<16x128xf32>
    %c0_58 = arith.constant 0 : index
    %c0_59 = arith.constant 0 : index
    %c0_60 = arith.constant 0 : index
    %99 = vector.load %arg7[%c0_58, %c0_59, %c0_60] : memref<1x16x128xf32, #tpu.memory_space<vmem>>, vector<1x16x128xf32>
    %100 = vector.shape_cast %99 : vector<1x16x128xf32> to vector<16x128xf32>
    %101 = vector.shape_cast %98 : vector<16x128xf32> to vector<1x16x128xf32>
    tpu.vector_store %arg7[%c0_58, %c0_59, %c0_60], %101 {strides = array<i32>} : memref<1x16x128xf32, #tpu.memory_space<vmem>>, vector<1x16x128xf32>,
    return
  }
  func.func @transform_1(%arg0: i32, %arg1: i32) -> (i32, i32, i32) {
    %c0_i32 = arith.constant 0 : i32
    %c0_i32_0 = arith.constant 0 : i32
    %c0_i32_1 = arith.constant 0 : i32
    %c0_i32_2 = arith.constant 0 : i32
    return %c0_i32, %c0_i32_0, %c0_i32_1 : i32, i32, i32
  }
  func.func @transform_2(%arg0: i32, %arg1: i32) -> (i32, i32, i32) {
    %c0_i32 = arith.constant 0 : i32
    %c0_i32_0 = arith.constant 0 : i32
    %c0_i32_1 = arith.constant 0 : i32
    %c0_i32_2 = arith.constant 0 : i32
    return %c0_i32, %c0_i32_0, %c0_i32_1 : i32, i32, i32
  }
  func.func @transform_3(%arg0: i32, %arg1: i32) -> (i32, i32, i32) {
    %c0_i32 = arith.constant 0 : i32
    %c0_i32_0 = arith.constant 0 : i32
    %c0_i32_1 = arith.constant 0 : i32
    %c0_i32_2 = arith.constant 0 : i32
    return %c0_i32, %c0_i32_0, %c0_i32_1 : i32, i32, i32
  }
  func.func @transform_4(%arg0: i32, %arg1: i32) -> (i32, i32, i32) {
    %c0_i32 = arith.constant 0 : i32
    %c0_i32_0 = arith.constant 0 : i32
    %c0_i32_1 = arith.constant 0 : i32
    %c0_i32_2 = arith.constant 0 : i32
    return %c0_i32, %c0_i32_0, %c0_i32_1 : i32, i32, i32
  }
  func.func @transform_5(%arg0: i32, %arg1: i32) -> (i32, i32, i32) {
    %c0_i32 = arith.constant 0 : i32
    %c0_i32_0 = arith.constant 0 : i32
    return %arg0, %arg1, %c0_i32 : i32, i32, i32
  }
}

</mosaic_0001>

<llo_original>
// kernel: tpu_custom_call.1
$region0: #{tpu_custom_call.1}
  #allocation0 [shape = 'u32[]', space=smem, size = 0x4, offset = 0x4, fixed_abs, tag = 'smem constant byte address 0x4 - core index']
  #allocation1 [shape = 'u32[144,128]{1,0:T(1,128)}', space=vmem, size = 0x12000, scoped, tag = 'internal scratch']
  #allocation2 [shape = 'f32[2,32,128]{2,1,0:T(8,128)}', space=vmem, size = 0x8000, scoped, tag = 'scratch operand']
  #allocation3 [shape = 's32[2]{0}', space=sflag, size = 0x8, scoped, tag = 'scratch operand']
  #allocation10 [shape = 's32[]', space=sflag, size = 0x4, offset = 0, fixed_abs, tag = 'sflag constant byte address 0x0 - dummy sync flag']
  #allocation11 [shape = 's32[]', space=sflag, size = 0x4, offset = 0, fixed_abs, tag = 'sflag constant byte address 0x0 - dummy sync flag']
  #allocation12 [shape = 'u32[]', space=smem, size = 0x4, offset = 0x44, fixed_abs, tag = 'smem constant byte address 0x44 - assertion arg 0']
  #allocation13 [shape = 'u32[]', space=smem, size = 0x4, offset = 0x48, fixed_abs, tag = 'smem constant byte address 0x48 - assertion arg 1']
  %s0 = inlined_call_operand.hbm [shape: f32[2,32,128], index: 0, kind: input, shape index: {}]
  %s1 = inlined_call_operand.hbm [shape: f32[3,384,128], index: 1, kind: input, shape index: {}]
  %s2 = inlined_call_operand.vmem [shape: f32[3,1,128], index: 2, kind: input, shape index: {}]
  %s3 = inlined_call_operand.hbm [shape: f32[3,128,128], index: 3, kind: input, shape index: {}]
  %s4 = inlined_call_operand.vmem [shape: f32[3,1,128], index: 4, kind: input, shape index: {}]
  %s5 = inlined_call_operand.hbm [shape: f32[2,16,128], index: 5, kind: output, shape index: {}]
  %s6 = sld [smem:[#allocation0]]
  $region65: #{tpu_custom_call.1} parent=0
    _
  %s8 = ssub.s32 1, %s6
  %s9 = scalar_select 0, %s8, %s6
  $region1: #{tpu_custom_call.1} parent=0
    #allocation4 [shape = 'u8[589824]{0}', space=vmem, size = 0x90000, scoped, tag = 'input window, operand 1, single buffered']
    #allocation5 [shape = 's32[2]{0}', space=sflag, size = 0x8, scoped, tag = 'scoped memory for tpu_custom_call.1']
    #allocation6 [shape = 's32[2]{0}', space=sflag, size = 0x8, scoped, tag = 'scoped memory for tpu_custom_call.1']
    #allocation7 [shape = 'u8[196608]{0}', space=vmem, size = 0x30000, scoped, tag = 'input window, operand 3, single buffered']
    #allocation8 [shape = 's32[1]{0}', space=sflag, size = 0x4, scoped, tag = 'scoped memory for tpu_custom_call.1']
    #allocation9 [shape = 'u8[16384]{0}', space=vmem, size = 0x4000, scoped, tag = 'output window, operand 0']
    %10 = vsyncpa [#allocation5], 0
    %11 = vsyncpa [#allocation8], 0
    %12 = vsyncpa [#allocation6], 0
    %s13 = scalar_lea.sflag [#allocation6], 1
    %14 = vsyncpa %s13, 0
    loop: start=0, step=1, limit=4
    $region2: #{tpu_custom_call.1} parent=1 // loop_pre_header
      _
    $region3: #{tpu_custom_call.1} parent=1 // loop_header
      %s16 = sphi 0, %s20
      %p17 = scmp.ge.s32.totalorder %s16, 4
      %s23 = sphi 0, %s35
      %s24 = sphi 0, %s31
      %s25 = sphi 0, %s23
      %s26 = sphi 0, %s24
      %s27 = sphi 0, %s25
      %s28 = sphi 0, %s26
      %s36 = sphi 0, %s36
      %s38 = sphi 0, %s36
      %s39 = sphi 0, %s38
      %s53 = sphi 0, %s39
      %s57 = sphi 0, %s57
      %s59 = sphi 0, %s57
      %s60 = sphi 0, %s59
      %s74 = sphi 0, %s60
      %s78 = sphi 0, %s78
      %s80 = sphi 0, %s78
      %s81 = sphi 0, %s80
      %s95 = sphi 0, %s81
      %s99 = sphi 0, %s99
      %s101 = sphi 0, %s99
      %s102 = sphi 0, %s101
      %s116 = sphi 0, %s102
      %s124 = sphi 0, %s126
      %s127 = sphi 0, %s124
      %s128 = sphi 0, %s127
      %s144 = sphi 0, %s128
    $region4: #{tpu_custom_call.1} parent=1 // loop_header_branch
      %19 = sbr.rel (%p17) target = $region8
    $region5: #{tpu_custom_call.1} parent=1 // loop_body
      %s21 = ssub.s32 %s16, 1
      %s22 = ssub.s32 %s16, 2
      %s29 = sadd.s32 1, %s24
      %p30 = scmp.ge.s32.totalorder %s29, 1
      %s31 = scalar_select %p30, 0, %s29
      %s32 = sadd.s32 1, %s23
      %s33 = scalar_select %p30, %s32, %s23
      %p34 = scmp.ge.s32.totalorder %s33, 2
      %s35 = scalar_select %p34, 0, %s33
      %s37 = sadd.s32 %s36, 1
      %p40 = scmp.eq.s32.totalorder %s16, 1
      %p41 = scmp.ne.s32.totalorder %s36, %s38
      %p42 = scmp.eq.s32.totalorder %s16, 0
      %p43 = por %p41, %p42
      %p44 = scmp.ne.s32.totalorder %s36, %s38
      %p45 = scmp.eq.s32.totalorder %s21, 1
      %p46 = por %p44, %p45
      %p47 = scmp.ne.s32.totalorder %s38, %s39
      %p48 = scmp.eq.s32.totalorder %s21, 0
      %p49 = por %p47, %p48
      %p50 = scmp.ne.s32.totalorder %s38, %s39
      %p51 = scmp.eq.s32.totalorder %s22, 1
      %p52 = por %p50, %p51
      %p54 = scmp.ne.s32.totalorder %s39, %s53
      %p55 = scmp.eq.s32.totalorder %s22, 0
      %p56 = por %p54, %p55
      %s58 = sadd.s32 %s57, 1
      %p61 = scmp.eq.s32.totalorder %s16, 1
      %p62 = scmp.ne.s32.totalorder %s57, %s59
      %p63 = scmp.eq.s32.totalorder %s16, 0
      %p64 = por %p62, %p63
      %p65 = scmp.ne.s32.totalorder %s57, %s59
      %p66 = scmp.eq.s32.totalorder %s21, 1
      %p67 = por %p65, %p66
      %p68 = scmp.ne.s32.totalorder %s59, %s60
      %p69 = scmp.eq.s32.totalorder %s21, 0
      %p70 = por %p68, %p69
      %p71 = scmp.ne.s32.totalorder %s59, %s60
      %p72 = scmp.eq.s32.totalorder %s22, 1
      %p73 = por %p71, %p72
      %p75 = scmp.ne.s32.totalorder %s60, %s74
      %p76 = scmp.eq.s32.totalorder %s22, 0
      %p77 = por %p75, %p76
      %s79 = sadd.s32 %s78, 1
      %p82 = scmp.eq.s32.totalorder %s16, 1
      %p83 = scmp.ne.s32.totalorder %s78, %s80
      %p84 = scmp.eq.s32.totalorder %s16, 0
      %p85 = por %p83, %p84
      %p86 = scmp.ne.s32.totalorder %s78, %s80
      %p87 = scmp.eq.s32.totalorder %s21, 1
      %p88 = por %p86, %p87
      %p89 = scmp.ne.s32.totalorder %s80, %s81
      %p90 = scmp.eq.s32.totalorder %s21, 0
      %p91 = por %p89, %p90
      %p92 = scmp.ne.s32.totalorder %s80, %s81
      %p93 = scmp.eq.s32.totalorder %s22, 1
      %p94 = por %p92, %p93
      %p96 = scmp.ne.s32.totalorder %s81, %s95
      %p97 = scmp.eq.s32.totalorder %s22, 0
      %p98 = por %p96, %p97
      %s100 = sadd.s32 %s99, 1
      %p103 = scmp.eq.s32.totalorder %s16, 1
      %p104 = scmp.ne.s32.totalorder %s99, %s101
      %p105 = scmp.eq.s32.totalorder %s16, 0
      %p106 = por %p104, %p105
      %p107 = scmp.ne.s32.totalorder %s99, %s101
      %p108 = scmp.eq.s32.totalorder %s21, 1
      %p109 = por %p107, %p108
      %p110 = scmp.ne.s32.totalorder %s101, %s102
      %p111 = scmp.eq.s32.totalorder %s21, 0
      %p112 = por %p110, %p111
      %p113 = scmp.ne.s32.totalorder %s101, %s102
      %p114 = scmp.eq.s32.totalorder %s22, 1
      %p115 = por %p113, %p114
      %p117 = scmp.ne.s32.totalorder %s102, %s116
      %p118 = scmp.eq.s32.totalorder %s22, 0
      %p119 = por %p117, %p118
      %s120 = ssub.s32 %s23, %s35
      %s121 = ssub.s32 %s24, %s31
      %s122 = sor.u32 %s120, %s121
      %p123 = scmp.eq.s32.totalorder %s122, 0
      %s125 = sadd.s32 %s124, 1
      %s126 = scalar_select %p123, %s124, %s125
      %p129 = pneg %p123
      %p130 = scmp.eq.s32.totalorder %s16, 1
      %p131 = por %p129, %p130
      %p132 = scmp.ne.s32.totalorder %s124, %s127
      %p133 = scmp.eq.s32.totalorder %s16, 0
      %p134 = por %p132, %p133
      %p135 = scmp.ne.s32.totalorder %s124, %s127
      %p136 = scmp.eq.s32.totalorder %s21, 1
      %p137 = por %p135, %p136
      %p138 = scmp.ne.s32.totalorder %s127, %s128
      %p139 = scmp.eq.s32.totalorder %s21, 0
      %p140 = por %p138, %p139
      %p141 = scmp.ne.s32.totalorder %s127, %s128
      %p142 = scmp.eq.s32.totalorder %s22, 1
      %p143 = por %p141, %p142
      %p145 = scmp.ne.s32.totalorder %s128, %s144
      %p146 = scmp.eq.s32.totalorder %s22, 0
      %p147 = por %p145, %p146
      %p148 = scmp.le.s32.totalorder 1, %s16
      %p149 = scmp.lt.s32.totalorder %s16, 3
      %p150 = pnand %p148, %p149
      %p151 = pneg %p150
      // Predicated region
      $region9: #{tpu_custom_call.1} parent=5 // pred_check
        _
      $region10: #{tpu_custom_call.1} parent=5 // pred_check_branch
        %153 = sbr.rel (%p150) target = $region12
      $region11: #{tpu_custom_call.1} parent=5 // pred_region
        %s154 = ssub.s32 %s16, 1
        // Predicated region
        $region13: #{tpu_custom_call.1} parent=11 // pred_check
          %p155 = pneg %p49
        $region14: #{tpu_custom_call.1} parent=11 // pred_check_branch
          %157 = sbr.rel (%p155) target = $region16
        $region15: #{tpu_custom_call.1} parent=11 // pred_region
          %s159 = ssub.s32 18432, 18432
          %160 = vsyncadd [#allocation5], %s159
          %s161 = sshll.u32 [#allocation4], 4
          %s162 = int_to_ptr.vmem [resolvable:$true] %s161
          %167 = dma.hbm_to_vmem [thread:$0]  %s1, 18432, %s162, [#allocation5], 128, 128, 8
        $region16: #{tpu_custom_call.1} parent=11 // pred_fallthru
          _
        // Predicated region
        $region17: #{tpu_custom_call.1} parent=11 // pred_check
          %p168 = pneg %p70
        $region18: #{tpu_custom_call.1} parent=11 // pred_check_branch
          %170 = sbr.rel (%p168) target = $region20
        $region19: #{tpu_custom_call.1} parent=11 // pred_region
          _
        $region20: #{tpu_custom_call.1} parent=11 // pred_fallthru
          _
        // Predicated region
        $region21: #{tpu_custom_call.1} parent=11 // pred_check
          %p171 = pneg %p91
        $region22: #{tpu_custom_call.1} parent=11 // pred_check_branch
          %173 = sbr.rel (%p171) target = $region24
        $region23: #{tpu_custom_call.1} parent=11 // pred_region
          %s175 = ssub.s32 6144, 6144
          %176 = vsyncadd [#allocation8], %s175
          %s177 = sshll.u32 [#allocation7], 4
          %s178 = int_to_ptr.vmem [resolvable:$true] %s177
          %183 = dma.hbm_to_vmem [thread:$0]  %s3, 6144, %s178, [#allocation8], 128, 128, 8
        $region24: #{tpu_custom_call.1} parent=11 // pred_fallthru
          _
        // Predicated region
        $region25: #{tpu_custom_call.1} parent=11 // pred_check
          %p184 = pneg %p112
        $region26: #{tpu_custom_call.1} parent=11 // pred_check_branch
          %186 = sbr.rel (%p184) target = $region28
        $region27: #{tpu_custom_call.1} parent=11 // pred_region
          _
        $region28: #{tpu_custom_call.1} parent=11 // pred_fallthru
          _
      $region12: #{tpu_custom_call.1} parent=5 // pred_fallthru
        _
      %p187 = scmp.lt.s32.totalorder %s16, 2
      // Predicated region
      $region29: #{tpu_custom_call.1} parent=5 // pred_check
        %p188 = pneg %p187
      $region30: #{tpu_custom_call.1} parent=5 // pred_check_branch
        %190 = sbr.rel (%p188) target = $region32
      $region31: #{tpu_custom_call.1} parent=5 // pred_region
        _
      $region32: #{tpu_custom_call.1} parent=5 // pred_fallthru
        _
      %p191 = scmp.le.s32.totalorder 1, %s16
      %p192 = scmp.lt.s32.totalorder %s16, 3
      %p193 = pnand %p191, %p192
      %p194 = pneg %p193
      // Predicated region
      $region33: #{tpu_custom_call.1} parent=5 // pred_check
        _
      $region34: #{tpu_custom_call.1} parent=5 // pred_check_branch
        %196 = sbr.rel (%p193) target = $region36
      $region35: #{tpu_custom_call.1} parent=5 // pred_region
        %s197 = ssub.s32 %s16, 1
        // Predicated region
        $region37: #{tpu_custom_call.1} parent=35 // pred_check
          %p198 = pneg %p49
        $region38: #{tpu_custom_call.1} parent=35 // pred_check_branch
          %200 = sbr.rel (%p198) target = $region40
        $region39: #{tpu_custom_call.1} parent=35 // pred_region
          %201 = dma.done [#allocation5], 18432
        $region40: #{tpu_custom_call.1} parent=35 // pred_fallthru
          _
        // Predicated region
        $region41: #{tpu_custom_call.1} parent=35 // pred_check
          %p202 = pneg %p91
        $region42: #{tpu_custom_call.1} parent=35 // pred_check_branch
          %204 = sbr.rel (%p202) target = $region44
        $region43: #{tpu_custom_call.1} parent=35 // pred_region
          %205 = dma.done [#allocation8], 6144
        $region44: #{tpu_custom_call.1} parent=35 // pred_fallthru
          _
        %p206 = pneg %p49
        %p207 = pneg %p46
        %p208 = pneg %p70
        %p209 = pneg %p67
        %p210 = pneg %p91
        %p211 = pneg %p88
        %p212 = pneg %p112
        %p213 = pneg %p109
        %p214 = pneg %p140
        %p215 = pneg %p137
        %s216 = sand.u32 %s127, 1
        %s217 = scalar_lea.sflag [#allocation6], %s216
        %s218 = sand.u32 %s127, 1
        %s219 = smul.addr %s218, 16
        %s220 = scalar_lea.vmem [#allocation9], %s219
        %s221 = smul.u32 2, %s26
        %p222 = scmp.lt.s32.totalorder %s26, 0
        %s223 = ssub.s32 0, %s26
        %s224 = scalar_select %p222, %s223, %s26
        %s225 = sand.u32 %s224, 1
        %s226 = ssub.s32 0, %s225
        %s227 = scalar_select %p222, %s226, %s225
        %p228 = scmp.eq.s32.totalorder %s26, 0
        // Predicated region
        $region45: #{tpu_custom_call.1} parent=35 // pred_check
          %p229 = pneg %p228
        $region46: #{tpu_custom_call.1} parent=35 // pred_check_branch
          %231 = sbr.rel (%p229) target = $region48
        $region47: #{tpu_custom_call.1} parent=35 // pred_region
          %p232 = scmp.lt.s32.totalorder %s26, 0
          %s233 = scalar_select %p232, %s26, 0
          %s234 = smul.u32 %s233, 16
          %s235 = smul.u32 %s25, 32
          %s236 = sadd.s32 %s234, %s235
          %s237 = smul.addr %s236, 16
          %s238 = scalar_lea.hbm %s0, %s237
          %s239 = smul.u32 %s227, 32
          %s240 = scalar_lea.vmem [#allocation2], %s239
          %s241 = scalar_lea.sflag [#allocation3], %s227
          // Predicated region
          $region49: #{tpu_custom_call.1} parent=47 // pred_check
            _
          $region50: #{tpu_custom_call.1} parent=47 // pred_check_branch
            %243 = sbr.rel target = $region52
          $region51: #{tpu_custom_call.1} parent=47 // pred_region
            %244 = sst [smem:[#allocation12]] [#allocation11]
            %245 = sst [smem:[#allocation13]] [#allocation10]
          $region52: #{tpu_custom_call.1} parent=47 // pred_fallthru
            _
          %247 = shalt.err (0)
          %s249 = sshll.u32 %s240, 4
          %s250 = int_to_ptr.vmem [resolvable:$true] %s249
          %252 = dma.hbm_to_vmem [thread:$0]  %s238, 512, %s250, %s241
        $region48: #{tpu_custom_call.1} parent=35 // pred_fallthru
          _
        %p253 = scmp.lt.s32.totalorder %s26, 0
        %s254 = scalar_select %p253, %s26, 0
        %s255 = smul.u32 %s254, 16
        %s256 = smul.u32 %s227, 32
        %s257 = scalar_lea.vmem [#allocation2], %s256
        %s258 = scalar_lea.sflag [#allocation3], %s227
        %s259 = smul.u32 32, 1
        %s260 = sshll.u32 %s259, 4
        %261 = dma.done %s258, %s260
        %v262 = vld [vmem:[%s257] sm:$0xff]
        %v263 = vld [vmem:[%s257 + $0x8] sm:$0xff]
        %v264 = vld [vmem:[%s257 + $0x10] sm:$0xff]
        %v265 = vld [vmem:[%s257 + $0x18] sm:$0xff]
        %v266 = vlaneseq
        %v267 = vshrl.u32 %v266, 7
        %v268 = vadd.s32 %v267, 8
        %v269 = vadd.s32 %v267, 16
        %v270 = vadd.s32 %v267, 24
        %s271 = smul.u32 %s26, 16
        %s272 = ssub.s32 %s271, 8
        %v273 = vstv %s272
        %v274 = vadd.s32 %v267, %v273
        %v275 = vadd.s32 %v268, %v273
        %v276 = vadd.s32 %v269, %v273
        %v277 = vadd.s32 %v270, %v273
        %vm278 = vcmp.ge.s32.totalorder %v274, 0
        %vm279 = vcmp.ge.s32.totalorder %v275, 0
        %vm280 = vcmp.ge.s32.totalorder %v276, 0
        %vm281 = vcmp.ge.s32.totalorder %v277, 0
        %vm282 = vcmp.lt.s32.totalorder %v274, 16
        %vm283 = vcmp.lt.s32.totalorder %v275, 16
        %vm284 = vcmp.lt.s32.totalorder %v276, 16
        %vm285 = vcmp.lt.s32.totalorder %v277, 16
        %vm286 = vmand %vm278, %vm282
        %vm287 = vmand %vm279, %vm283
        %vm288 = vmand %vm280, %vm284
        %vm289 = vmand %vm281, %vm285
        %v290 = vmax.f32 %v262, 0.0
        %v291 = vmax.f32 %v263, 0.0
        %v292 = vmax.f32 %v264, 0.0
        %v293 = vmax.f32 %v265, 0.0
        %v294 = vrot.slane %v290, 7
        %v295 = vrot.slane %v291, 7
        %v296 = vrot.slane %v292, 7
        %v297 = vrot.slane %v293, 7
        %vm298 = vcmp.lt.s32.totalorder %v267, 1
        %v299 = vsel %vm298, %v296, %v297
        %v300 = vsel %vm298, %v295, %v296
        %v301 = vsel %vm298, %v294, %v295
        %v302 = vsel %vm298, %v297, %v294
        %v303 = vrot.slane %v290, 1
        %v304 = vrot.slane %v291, 1
        %v305 = vrot.slane %v292, 1
        %v306 = vrot.slane %v293, 1
        %vm307 = vcmp.lt.s32.totalorder %v267, 7
        %v308 = vsel %vm307, %v305, %v306
        %v309 = vsel %vm307, %v304, %v305
        %v310 = vsel %vm307, %v303, %v304
        %v311 = vsel %vm307, %v306, %v303
        %v312 = vld [vmem:[#allocation4] sm:$0xff]
        %v313 = vld [vmem:[#allocation4 + $0x8] sm:$0xff]
        %v314 = vld [vmem:[#allocation4 + $0x10] sm:$0xff]
        %v315 = vld [vmem:[#allocation4 + $0x18] sm:$0xff]
        %v316 = vld [vmem:[#allocation4 + $0x20] sm:$0xff]
        %v317 = vld [vmem:[#allocation4 + $0x28] sm:$0xff]
        %v318 = vld [vmem:[#allocation4 + $0x30] sm:$0xff]
        %v319 = vld [vmem:[#allocation4 + $0x38] sm:$0xff]
        %v320 = vld [vmem:[#allocation4 + $0x40] sm:$0xff]
        %v321 = vld [vmem:[#allocation4 + $0x48] sm:$0xff]
        %v322 = vld [vmem:[#allocation4 + $0x50] sm:$0xff]
        %v323 = vld [vmem:[#allocation4 + $0x58] sm:$0xff]
        %v324 = vld [vmem:[#allocation4 + $0x60] sm:$0xff]
        %v325 = vld [vmem:[#allocation4 + $0x68] sm:$0xff]
        %v326 = vld [vmem:[#allocation4 + $0x70] sm:$0xff]
        %v327 = vld [vmem:[#allocation4 + $0x78] sm:$0xff]
        %v328 = vld [vmem:[#allocation4 + $0x80] sm:$0xff]
        %v329 = vld [vmem:[#allocation4 + $0x88] sm:$0xff]
        %v330 = vld [vmem:[#allocation4 + $0x90] sm:$0xff]
        %v331 = vld [vmem:[#allocation4 + $0x98] sm:$0xff]
        %v332 = vld [vmem:[#allocation4 + $0xa0] sm:$0xff]
        %v333 = vld [vmem:[#allocation4 + $0xa8] sm:$0xff]
        %v334 = vld [vmem:[#allocation4 + $0xb0] sm:$0xff]
        %v335 = vld [vmem:[#allocation4 + $0xb8] sm:$0xff]
        %v336 = vld [vmem:[#allocation4 + $0xc0] sm:$0xff]
        %v337 = vld [vmem:[#allocation4 + $0xc8] sm:$0xff]
        %v338 = vld [vmem:[#allocation4 + $0xd0] sm:$0xff]
        %v339 = vld [vmem:[#allocation4 + $0xd8] sm:$0xff]
        %v340 = vld [vmem:[#allocation4 + $0xe0] sm:$0xff]
        %v341 = vld [vmem:[#allocation4 + $0xe8] sm:$0xff]
        %v342 = vld [vmem:[#allocation4 + $0xf0] sm:$0xff]
        %v343 = vld [vmem:[#allocation4 + $0xf8] sm:$0xff]
        %v344 = vld [vmem:[#allocation4 + $0x100] sm:$0xff]
        %v345 = vld [vmem:[#allocation4 + $0x108] sm:$0xff]
        %v346 = vld [vmem:[#allocation4 + $0x110] sm:$0xff]
        %v347 = vld [vmem:[#allocation4 + $0x118] sm:$0xff]
        %v348 = vld [vmem:[#allocation4 + $0x120] sm:$0xff]
        %v349 = vld [vmem:[#allocation4 + $0x128] sm:$0xff]
        %v350 = vld [vmem:[#allocation4 + $0x130] sm:$0xff]
        %v351 = vld [vmem:[#allocation4 + $0x138] sm:$0xff]
        %v352 = vld [vmem:[#allocation4 + $0x140] sm:$0xff]
        %v353 = vld [vmem:[#allocation4 + $0x148] sm:$0xff]
        %v354 = vld [vmem:[#allocation4 + $0x150] sm:$0xff]
        %v355 = vld [vmem:[#allocation4 + $0x158] sm:$0xff]
        %v356 = vld [vmem:[#allocation4 + $0x160] sm:$0xff]
        %v357 = vld [vmem:[#allocation4 + $0x168] sm:$0xff]
        %v358 = vld [vmem:[#allocation4 + $0x170] sm:$0xff]
        %v359 = vld [vmem:[#allocation4 + $0x178] sm:$0xff]
        %v360 = vld [vmem:[%s2] sm:$0x1]
        %v362 = vlaneseq
        %v363 = vshrl.u32 %v362, 7
        %v364 = vsub.s32 0, %v363
        %v365 = vrot.slane %v360, %v364
        %367 = vmatprep.subr.mxu0 0.0
        %368 = vmatpush1.msra.mxu0 %v312
        %369 = vmatprep.subr.mxu0 0.0
        %370 = vmatpush1.msra.mxu0 %v313
        %371 = vmatprep.subr.mxu0 0.0
        %372 = vmatpush1.msra.mxu0 %v314
        %373 = vmatprep.subr.mxu0 0.0
        %374 = vmatpush1.msra.mxu0 %v315
        %375 = vmatprep.subr.mxu0 0.0
        %376 = vmatpush1.msra.mxu0 %v316
        %377 = vmatprep.subr.mxu0 0.0
        %378 = vmatpush1.msra.mxu0 %v317
        %379 = vmatprep.subr.mxu0 0.0
        %380 = vmatpush1.msra.mxu0 %v318
        %381 = vmatprep.subr.mxu0 0.0
        %382 = vmatpush1.msra.mxu0 %v319
        %383 = vmatprep.subr.mxu0 0.0
        %384 = vmatpush1.msra.mxu0 %v320
        %385 = vmatprep.subr.mxu0 0.0
        %386 = vmatpush1.msra.mxu0 %v321
        %387 = vmatprep.subr.mxu0 0.0
        %388 = vmatpush1.msra.mxu0 %v322
        %389 = vmatprep.subr.mxu0 0.0
        %390 = vmatpush1.msra.mxu0 %v323
        %391 = vmatprep.subr.mxu0 0.0
        %392 = vmatpush1.msra.mxu0 %v324
        %393 = vmatprep.subr.mxu0 0.0
        %394 = vmatpush1.msra.mxu0 %v325
        %395 = vmatprep.subr.mxu0 0.0
        %396 = vmatpush1.msra.mxu0 %v326
        %397 = vmatprep.subr.mxu0 0.0
        %398 = vmatpush1.msra.mxu0 %v327
        %399 = vmatprep.subr.mxu0 0.0
        %400 = vmatpush1.msra.mxu0 %v328
        %401 = vmatprep.subr.mxu0 0.0
        %402 = vmatpush1.msra.mxu0 %v329
        %403 = vmatprep.subr.mxu0 0.0
        %404 = vmatpush1.msra.mxu0 %v330
        %405 = vmatprep.subr.mxu0 0.0
        %406 = vmatpush1.msra.mxu0 %v331
        %407 = vmatprep.subr.mxu0 0.0
        %408 = vmatpush1.msra.mxu0 %v332
        %409 = vmatprep.subr.mxu0 0.0
        %410 = vmatpush1.msra.mxu0 %v333
        %411 = vmatprep.subr.mxu0 0.0
        %412 = vmatpush1.msra.mxu0 %v334
        %413 = vmatprep.subr.mxu0 0.0
        %414 = vmatpush1.msra.mxu0 %v335
        %415 = vmatprep.subr.mxu0 0.0
        %416 = vmatpush1.msra.mxu0 %v336
        %417 = vmatprep.subr.mxu0 0.0
        %418 = vmatpush1.msra.mxu0 %v337
        %419 = vmatprep.subr.mxu0 0.0
        %420 = vmatpush1.msra.mxu0 %v338
        %421 = vmatprep.subr.mxu0 0.0
        %422 = vmatpush1.msra.mxu0 %v339
        %423 = vmatprep.subr.mxu0 0.0
        %424 = vmatpush1.msra.mxu0 %v340
        %425 = vmatprep.subr.mxu0 0.0
        %426 = vmatpush1.msra.mxu0 %v341
        %427 = vmatprep.subr.mxu0 0.0
        %428 = vmatpush1.msra.mxu0 %v342
        %429 = vmatprep.subr.mxu0 0.0
        %430 = vmatpush1.msra.mxu0 %v343
        %431 = vmatprep.mubr.f32.mxu0 %v290
        %432 = vmatmul.mubr.f32.gmra.mrb[0].mxu0 %v302
        %v433 = vpop.f32.mrb[0].mxu0
        %v434 = vadd.f32 %v365, %v433
        %v435 = vpop.f32.mrb[0].mxu0
        %436 = vmatprep.mubr.f32.mxu0 %v291
        %437 = vmatmul.mubr.f32.gmra.mrb[0].mxu0 %v301
        %v438 = vpop.f32.mrb[0].mxu0
        %v439 = vadd.f32 %v365, %v438
        %v440 = vpop.f32.mrb[0].mxu0
        %441 = vmatprep.mubr.f32.mxu0 %v292
        %442 = vmatmul.mubr.f32.gmra.mrb[0].mxu0 %v300
        %v443 = vpop.f32.mrb[0].mxu0
        %v444 = vadd.f32 %v365, %v443
        %v445 = vpop.f32.mrb[0].mxu0
        %446 = vmatprep.mubr.f32.mxu0 %v293
        %447 = vmatmul.mubr.f32.gmra.mrb[0].mxu0 %v299
        %v448 = vpop.f32.mrb[0].mxu0
        %v449 = vadd.f32 %v365, %v448
        %v450 = vpop.f32.mrb[0].mxu0
        %451 = vdwg.mxu0
        %452 = vmatprep.subr.mxu0 0.0
        %453 = vmatpush1.msra.mxu0 %v344
        %454 = vmatprep.subr.mxu0 0.0
        %455 = vmatpush1.msra.mxu0 %v345
        %456 = vmatprep.subr.mxu0 0.0
        %457 = vmatpush1.msra.mxu0 %v346
        %458 = vmatprep.subr.mxu0 0.0
        %459 = vmatpush1.msra.mxu0 %v347
        %460 = vmatprep.subr.mxu0 0.0
        %461 = vmatpush1.msra.mxu0 %v348
        %462 = vmatprep.subr.mxu0 0.0
        %463 = vmatpush1.msra.mxu0 %v349
        %464 = vmatprep.subr.mxu0 0.0
        %465 = vmatpush1.msra.mxu0 %v350
        %466 = vmatprep.subr.mxu0 0.0
        %467 = vmatpush1.msra.mxu0 %v351
        %468 = vmatprep.subr.mxu0 0.0
        %469 = vmatpush1.msra.mxu0 %v352
        %470 = vmatprep.subr.mxu0 0.0
        %471 = vmatpush1.msra.mxu0 %v353
        %472 = vmatprep.subr.mxu0 0.0
        %473 = vmatpush1.msra.mxu0 %v354
        %474 = vmatprep.subr.mxu0 0.0
        %475 = vmatpush1.msra.mxu0 %v355
        %476 = vmatprep.subr.mxu0 0.0
        %477 = vmatpush1.msra.mxu0 %v356
        %478 = vmatprep.subr.mxu0 0.0
        %479 = vmatpush1.msra.mxu0 %v357
        %480 = vmatprep.subr.mxu0 0.0
        %481 = vmatpush1.msra.mxu0 %v358
        %482 = vmatprep.subr.mxu0 0.0
        %483 = vmatpush1.msra.mxu0 %v359
        %484 = vmatprep.subr.mxu0 0.0
        %485 = vmatpush1.msra.mxu0 0.0
        %486 = vmatprep.subr.mxu0 0.0
        %487 = vmatpush1.msra.mxu0 0.0
        %488 = vmatprep.subr.mxu0 0.0
        %489 = vmatpush1.msra.mxu0 0.0
        %490 = vmatprep.subr.mxu0 0.0
        %491 = vmatpush1.msra.mxu0 0.0
        %492 = vmatprep.subr.mxu0 0.0
        %493 = vmatpush1.msra.mxu0 0.0
        %494 = vmatprep.subr.mxu0 0.0
        %495 = vmatpush1.msra.mxu0 0.0
        %496 = vmatprep.subr.mxu0 0.0
        %497 = vmatpush1.msra.mxu0 0.0
        %498 = vmatprep.subr.mxu0 0.0
        %499 = vmatpush1.msra.mxu0 0.0
        %500 = vmatprep.subr.mxu0 0.0
        %501 = vmatpush1.msra.mxu0 0.0
        %502 = vmatprep.subr.mxu0 0.0
        %503 = vmatpush1.msra.mxu0 0.0
        %504 = vmatprep.subr.mxu0 0.0
        %505 = vmatpush1.msra.mxu0 0.0
        %506 = vmatprep.subr.mxu0 0.0
        %507 = vmatpush1.msra.mxu0 0.0
        %508 = vmatprep.subr.mxu0 0.0
        %509 = vmatpush1.msra.mxu0 0.0
        %510 = vmatprep.subr.mxu0 0.0
        %511 = vmatpush1.msra.mxu0 0.0
        %512 = vmatprep.subr.mxu0 0.0
        %513 = vmatpush1.msra.mxu0 0.0
        %514 = vmatprep.subr.mxu0 0.0
        %515 = vmatpush1.msra.mxu0 0.0
        %516 = vmatprep.mubr.f32.mxu0 0.0
        %517 = vmatmul.mubr.f32.gmra.mrb[0].mxu0 %v310
        %v518 = vpop.f32.mrb[0].mxu0
        %v519 = vadd.f32 %v434, %v518
        %v520 = vpop.f32.mrb[0].mxu0
        %521 = vmatprep.mubr.f32.mxu0 0.0
        %522 = vmatmul.mubr.f32.gmra.mrb[0].mxu0 %v309
        %v523 = vpop.f32.mrb[0].mxu0
        %v524 = vadd.f32 %v439, %v523
        %v525 = vpop.f32.mrb[0].mxu0
        %526 = vmatprep.mubr.f32.mxu0 0.0
        %527 = vmatmul.mubr.f32.gmra.mrb[0].mxu0 %v308
        %v528 = vpop.f32.mrb[0].mxu0
        %v529 = vadd.f32 %v444, %v528
        %v530 = vpop.f32.mrb[0].mxu0
        %531 = vmatprep.mubr.f32.mxu0 0.0
        %532 = vmatmul.mubr.f32.gmra.mrb[0].mxu0 %v311
        %v533 = vpop.f32.mrb[0].mxu0
        %v534 = vadd.f32 %v449, %v533
        %v535 = vpop.f32.mrb[0].mxu0
        %536 = vdwg.mxu0
        %v537 = vmax.f32 %v519, 0.0
        %v538 = vmax.f32 %v524, 0.0
        %v539 = vmax.f32 %v529, 0.0
        %v540 = vmax.f32 %v534, 0.0
        %v541 = vld [vmem:[#allocation7] sm:$0xff]
        %v542 = vld [vmem:[#allocation7 + $0x8] sm:$0xff]
        %v543 = vld [vmem:[#allocation7 + $0x10] sm:$0xff]
        %v544 = vld [vmem:[#allocation7 + $0x18] sm:$0xff]
        %v545 = vld [vmem:[#allocation7 + $0x20] sm:$0xff]
        %v546 = vld [vmem:[#allocation7 + $0x28] sm:$0xff]
        %v547 = vld [vmem:[#allocation7 + $0x30] sm:$0xff]
        %v548 = vld [vmem:[#allocation7 + $0x38] sm:$0xff]
        %v549 = vld [vmem:[#allocation7 + $0x40] sm:$0xff]
        %v550 = vld [vmem:[#allocation7 + $0x48] sm:$0xff]
        %v551 = vld [vmem:[#allocation7 + $0x50] sm:$0xff]
        %v552 = vld [vmem:[#allocation7 + $0x58] sm:$0xff]
        %v553 = vld [vmem:[#allocation7 + $0x60] sm:$0xff]
        %v554 = vld [vmem:[#allocation7 + $0x68] sm:$0xff]
        %v555 = vld [vmem:[#allocation7 + $0x70] sm:$0xff]
        %v556 = vld [vmem:[#allocation7 + $0x78] sm:$0xff]
        %v557 = vld [vmem:[%s4] sm:$0x1]
        %v559 = vlaneseq
        %v560 = vshrl.u32 %v559, 7
        %v561 = vsub.s32 0, %v560
        %v562 = vrot.slane %v557, %v561
        %564 = vmatprep.subr.mxu0 0.0
        %565 = vmatpush1.msra.mxu0 %v541
        %566 = vmatprep.subr.mxu0 0.0
        %567 = vmatpush1.msra.mxu0 %v542
        %568 = vmatprep.subr.mxu0 0.0
        %569 = vmatpush1.msra.mxu0 %v543
        %570 = vmatprep.subr.mxu0 0.0
        %571 = vmatpush1.msra.mxu0 %v544
        %572 = vmatprep.subr.mxu0 0.0
        %573 = vmatpush1.msra.mxu0 %v545
        %574 = vmatprep.subr.mxu0 0.0
        %575 = vmatpush1.msra.mxu0 %v546
        %576 = vmatprep.subr.mxu0 0.0
        %577 = vmatpush1.msra.mxu0 %v547
        %578 = vmatprep.subr.mxu0 0.0
        %579 = vmatpush1.msra.mxu0 %v548
        %580 = vmatprep.subr.mxu0 0.0
        %581 = vmatpush1.msra.mxu0 %v549
        %582 = vmatprep.subr.mxu0 0.0
        %583 = vmatpush1.msra.mxu0 %v550
        %584 = vmatprep.subr.mxu0 0.0
        %585 = vmatpush1.msra.mxu0 %v551
        %586 = vmatprep.subr.mxu0 0.0
        %587 = vmatpush1.msra.mxu0 %v552
        %588 = vmatprep.subr.mxu0 0.0
        %589 = vmatpush1.msra.mxu0 %v553
        %590 = vmatprep.subr.mxu0 0.0
        %591 = vmatpush1.msra.mxu0 %v554
        %592 = vmatprep.subr.mxu0 0.0
        %593 = vmatpush1.msra.mxu0 %v555
        %594 = vmatprep.subr.mxu0 0.0
        %595 = vmatpush1.msra.mxu0 %v556
        %596 = vmatprep.subr.mxu0 0.0
        %597 = vmatpush1.msra.mxu0 0.0
        %598 = vmatprep.subr.mxu0 0.0
        %599 = vmatpush1.msra.mxu0 0.0
        %600 = vmatprep.subr.mxu0 0.0
        %601 = vmatpush1.msra.mxu0 0.0
        %602 = vmatprep.subr.mxu0 0.0
        %603 = vmatpush1.msra.mxu0 0.0
        %604 = vmatprep.subr.mxu0 0.0
        %605 = vmatpush1.msra.mxu0 0.0
        %606 = vmatprep.subr.mxu0 0.0
        %607 = vmatpush1.msra.mxu0 0.0
        %608 = vmatprep.subr.mxu0 0.0
        %609 = vmatpush1.msra.mxu0 0.0
        %610 = vmatprep.subr.mxu0 0.0
        %611 = vmatpush1.msra.mxu0 0.0
        %612 = vmatprep.subr.mxu0 0.0
        %613 = vmatpush1.msra.mxu0 0.0
        %614 = vmatprep.subr.mxu0 0.0
        %615 = vmatpush1.msra.mxu0 0.0
        %616 = vmatprep.subr.mxu0 0.0
        %617 = vmatpush1.msra.mxu0 0.0
        %618 = vmatprep.subr.mxu0 0.0
        %619 = vmatpush1.msra.mxu0 0.0
        %620 = vmatprep.subr.mxu0 0.0
        %621 = vmatpush1.msra.mxu0 0.0
        %622 = vmatprep.subr.mxu0 0.0
        %623 = vmatpush1.msra.mxu0 0.0
        %624 = vmatprep.subr.mxu0 0.0
        %625 = vmatpush1.msra.mxu0 0.0
        %626 = vmatprep.subr.mxu0 0.0
        %627 = vmatpush1.msra.mxu0 0.0
        %628 = vmatprep.mubr.f32.mxu0 0.0
        %629 = vmatmul.mubr.f32.gmra.mrb[0].mxu0 %v537
        %v630 = vpop.f32.mrb[0].mxu0
        %v631 = vadd.f32 %v562, %v630
        %v632 = vpop.f32.mrb[0].mxu0
        %633 = vmatprep.mubr.f32.mxu0 0.0
        %634 = vmatmul.mubr.f32.gmra.mrb[0].mxu0 %v538
        %v635 = vpop.f32.mrb[0].mxu0
        %v636 = vadd.f32 %v562, %v635
        %v637 = vpop.f32.mrb[0].mxu0
        %638 = vmatprep.mubr.f32.mxu0 0.0
        %639 = vmatmul.mubr.f32.gmra.mrb[0].mxu0 %v539
        %v640 = vpop.f32.mrb[0].mxu0
        %v641 = vadd.f32 %v562, %v640
        %v642 = vpop.f32.mrb[0].mxu0
        %643 = vmatprep.mubr.f32.mxu0 0.0
        %644 = vmatmul.mubr.f32.gmra.mrb[0].mxu0 %v540
        %v645 = vpop.f32.mrb[0].mxu0
        %v646 = vadd.f32 %v562, %v645
        %v647 = vpop.f32.mrb[0].mxu0
        %648 = vdwg.mxu0
        %v649 = vsel %vm286, %v631, 0.0
        %v650 = vsel %vm287, %v636, 0.0
        %v651 = vsel %vm288, %v641, 0.0
        %v652 = vsel %vm289, %v646, 0.0
        %v653 = vadd.f32 %v262, %v649
        %v654 = vadd.f32 %v263, %v650
        %v655 = vadd.f32 %v264, %v651
        %v656 = vadd.f32 %v265, %v652
        %v657 = vmax.f32 %v653, 0.0
        %v658 = vmax.f32 %v654, 0.0
        %v659 = vmax.f32 %v655, 0.0
        %v660 = vmax.f32 %v656, 0.0
        %v661 = vrot.slane %v657, 6
        %v662 = vrot.slane %v658, 6
        %v663 = vrot.slane %v659, 6
        %v664 = vrot.slane %v660, 6
        %vm665 = vcmp.lt.s32.totalorder %v267, 2
        %v666 = vsel %vm665, %v663, %v664
        %v667 = vsel %vm665, %v662, %v663
        %v668 = vsel %vm665, %v661, %v662
        %v669 = vsel %vm665, %v664, %v661
        %v670 = vrot.slane %v657, 2
        %v671 = vrot.slane %v658, 2
        %v672 = vrot.slane %v659, 2
        %v673 = vrot.slane %v660, 2
        %vm674 = vcmp.lt.s32.totalorder %v267, 6
        %v675 = vsel %vm674, %v672, %v673
        %v676 = vsel %vm674, %v671, %v672
        %v677 = vsel %vm674, %v670, %v671
        %v678 = vsel %vm674, %v673, %v670
        %s679 = scalar_lea.vmem [#allocation4], 384
        %v680 = vld [vmem:[%s679] sm:$0xff]
        %v681 = vld [vmem:[%s679 + $0x8] sm:$0xff]
        %v682 = vld [vmem:[%s679 + $0x10] sm:$0xff]
        %v683 = vld [vmem:[%s679 + $0x18] sm:$0xff]
        %v684 = vld [vmem:[%s679 + $0x20] sm:$0xff]
        %v685 = vld [vmem:[%s679 + $0x28] sm:$0xff]
        %v686 = vld [vmem:[%s679 + $0x30] sm:$0xff]
        %v687 = vld [vmem:[%s679 + $0x38] sm:$0xff]
        %v688 = vld [vmem:[%s679 + $0x40] sm:$0xff]
        %v689 = vld [vmem:[%s679 + $0x48] sm:$0xff]
        %v690 = vld [vmem:[%s679 + $0x50] sm:$0xff]
        %v691 = vld [vmem:[%s679 + $0x58] sm:$0xff]
        %v692 = vld [vmem:[%s679 + $0x60] sm:$0xff]
        %v693 = vld [vmem:[%s679 + $0x68] sm:$0xff]
        %v694 = vld [vmem:[%s679 + $0x70] sm:$0xff]
        %v695 = vld [vmem:[%s679 + $0x78] sm:$0xff]
        %v696 = vld [vmem:[%s679 + $0x80] sm:$0xff]
        %v697 = vld [vmem:[%s679 + $0x88] sm:$0xff]
        %v698 = vld [vmem:[%s679 + $0x90] sm:$0xff]
        %v699 = vld [vmem:[%s679 + $0x98] sm:$0xff]
        %v700 = vld [vmem:[%s679 + $0xa0] sm:$0xff]
        %v701 = vld [vmem:[%s679 + $0xa8] sm:$0xff]
        %v702 = vld [vmem:[%s679 + $0xb0] sm:$0xff]
        %v703 = vld [vmem:[%s679 + $0xb8] sm:$0xff]
        %v704 = vld [vmem:[%s679 + $0xc0] sm:$0xff]
        %v705 = vld [vmem:[%s679 + $0xc8] sm:$0xff]
        %v706 = vld [vmem:[%s679 + $0xd0] sm:$0xff]
        %v707 = vld [vmem:[%s679 + $0xd8] sm:$0xff]
        %v708 = vld [vmem:[%s679 + $0xe0] sm:$0xff]
        %v709 = vld [vmem:[%s679 + $0xe8] sm:$0xff]
        %v710 = vld [vmem:[%s679 + $0xf0] sm:$0xff]
        %v711 = vld [vmem:[%s679 + $0xf8] sm:$0xff]
        %v712 = vld [vmem:[%s679 + $0x100] sm:$0xff]
        %v713 = vld [vmem:[%s679 + $0x108] sm:$0xff]
        %v714 = vld [vmem:[%s679 + $0x110] sm:$0xff]
        %v715 = vld [vmem:[%s679 + $0x118] sm:$0xff]
        %v716 = vld [vmem:[%s679 + $0x120] sm:$0xff]
        %v717 = vld [vmem:[%s679 + $0x128] sm:$0xff]
        %v718 = vld [vmem:[%s679 + $0x130] sm:$0xff]
        %v719 = vld [vmem:[%s679 + $0x138] sm:$0xff]
        %v720 = vld [vmem:[%s679 + $0x140] sm:$0xff]
        %v721 = vld [vmem:[%s679 + $0x148] sm:$0xff]
        %v722 = vld [vmem:[%s679 + $0x150] sm:$0xff]
        %v723 = vld [vmem:[%s679 + $0x158] sm:$0xff]
        %v724 = vld [vmem:[%s679 + $0x160] sm:$0xff]
        %v725 = vld [vmem:[%s679 + $0x168] sm:$0xff]
        %v726 = vld [vmem:[%s679 + $0x170] sm:$0xff]
        %v727 = vld [vmem:[%s679 + $0x178] sm:$0xff]
        %s728 = scalar_lea.vmem %s2, 1
        %v729 = vld [vmem:[%s728] sm:$0x1]
        %v731 = vlaneseq
        %v732 = vshrl.u32 %v731, 7
        %v733 = vsub.s32 0, %v732
        %v734 = vrot.slane %v729, %v733
        %736 = vmatprep.subr.mxu0 0.0
        %737 = vmatpush1.msra.mxu0 %v680
        %738 = vmatprep.subr.mxu0 0.0
        %739 = vmatpush1.msra.mxu0 %v681
        %740 = vmatprep.subr.mxu0 0.0
        %741 = vmatpush1.msra.mxu0 %v682
        %742 = vmatprep.subr.mxu0 0.0
        %743 = vmatpush1.msra.mxu0 %v683
        %744 = vmatprep.subr.mxu0 0.0
        %745 = vmatpush1.msra.mxu0 %v684
        %746 = vmatprep.subr.mxu0 0.0
        %747 = vmatpush1.msra.mxu0 %v685
        %748 = vmatprep.subr.mxu0 0.0
        %749 = vmatpush1.msra.mxu0 %v686
        %750 = vmatprep.subr.mxu0 0.0
        %751 = vmatpush1.msra.mxu0 %v687
        %752 = vmatprep.subr.mxu0 0.0
        %753 = vmatpush1.msra.mxu0 %v688
        %754 = vmatprep.subr.mxu0 0.0
        %755 = vmatpush1.msra.mxu0 %v689
        %756 = vmatprep.subr.mxu0 0.0
        %757 = vmatpush1.msra.mxu0 %v690
        %758 = vmatprep.subr.mxu0 0.0
        %759 = vmatpush1.msra.mxu0 %v691
        %760 = vmatprep.subr.mxu0 0.0
        %761 = vmatpush1.msra.mxu0 %v692
        %762 = vmatprep.subr.mxu0 0.0
        %763 = vmatpush1.msra.mxu0 %v693
        %764 = vmatprep.subr.mxu0 0.0
        %765 = vmatpush1.msra.mxu0 %v694
        %766 = vmatprep.subr.mxu0 0.0
        %767 = vmatpush1.msra.mxu0 %v695
        %768 = vmatprep.subr.mxu0 0.0
        %769 = vmatpush1.msra.mxu0 %v696
        %770 = vmatprep.subr.mxu0 0.0
        %771 = vmatpush1.msra.mxu0 %v697
        %772 = vmatprep.subr.mxu0 0.0
        %773 = vmatpush1.msra.mxu0 %v698
        %774 = vmatprep.subr.mxu0 0.0
        %775 = vmatpush1.msra.mxu0 %v699
        %776 = vmatprep.subr.mxu0 0.0
        %777 = vmatpush1.msra.mxu0 %v700
        %778 = vmatprep.subr.mxu0 0.0
        %779 = vmatpush1.msra.mxu0 %v701
        %780 = vmatprep.subr.mxu0 0.0
        %781 = vmatpush1.msra.mxu0 %v702
        %782 = vmatprep.subr.mxu0 0.0
        %783 = vmatpush1.msra.mxu0 %v703
        %784 = vmatprep.subr.mxu0 0.0
        %785 = vmatpush1.msra.mxu0 %v704
        %786 = vmatprep.subr.mxu0 0.0
        %787 = vmatpush1.msra.mxu0 %v705
        %788 = vmatprep.subr.mxu0 0.0
        %789 = vmatpush1.msra.mxu0 %v706
        %790 = vmatprep.subr.mxu0 0.0
        %791 = vmatpush1.msra.mxu0 %v707
        %792 = vmatprep.subr.mxu0 0.0
        %793 = vmatpush1.msra.mxu0 %v708
        %794 = vmatprep.subr.mxu0 0.0
        %795 = vmatpush1.msra.mxu0 %v709
        %796 = vmatprep.subr.mxu0 0.0
        %797 = vmatpush1.msra.mxu0 %v710
        %798 = vmatprep.subr.mxu0 0.0
        %799 = vmatpush1.msra.mxu0 %v711
        %800 = vmatprep.mubr.f32.mxu0 %v657
        %801 = vmatmul.mubr.f32.gmra.mrb[0].mxu0 %v669
        %v802 = vpop.f32.mrb[0].mxu0
        %v803 = vadd.f32 %v734, %v802
        %v804 = vpop.f32.mrb[0].mxu0
        %805 = vmatprep.mubr.f32.mxu0 %v658
        %806 = vmatmul.mubr.f32.gmra.mrb[0].mxu0 %v668
        %v807 = vpop.f32.mrb[0].mxu0
        %v808 = vadd.f32 %v734, %v807
        %v809 = vpop.f32.mrb[0].mxu0
        %810 = vmatprep.mubr.f32.mxu0 %v659
        %811 = vmatmul.mubr.f32.gmra.mrb[0].mxu0 %v667
        %v812 = vpop.f32.mrb[0].mxu0
        %v813 = vadd.f32 %v734, %v812
        %v814 = vpop.f32.mrb[0].mxu0
        %815 = vmatprep.mubr.f32.mxu0 %v660
        %816 = vmatmul.mubr.f32.gmra.mrb[0].mxu0 %v666
        %v817 = vpop.f32.mrb[0].mxu0
        %v818 = vadd.f32 %v734, %v817
        %v819 = vpop.f32.mrb[0].mxu0
        %820 = vdwg.mxu0
        %821 = vmatprep.subr.mxu0 0.0
        %822 = vmatpush1.msra.mxu0 %v712
        %823 = vmatprep.subr.mxu0 0.0
        %824 = vmatpush1.msra.mxu0 %v713
        %825 = vmatprep.subr.mxu0 0.0
        %826 = vmatpush1.msra.mxu0 %v714
        %827 = vmatprep.subr.mxu0 0.0
        %828 = vmatpush1.msra.mxu0 %v715
        %829 = vmatprep.subr.mxu0 0.0
        %830 = vmatpush1.msra.mxu0 %v716
        %831 = vmatprep.subr.mxu0 0.0
        %832 = vmatpush1.msra.mxu0 %v717
        %833 = vmatprep.subr.mxu0 0.0
        %834 = vmatpush1.msra.mxu0 %v718
        %835 = vmatprep.subr.mxu0 0.0
        %836 = vmatpush1.msra.mxu0 %v719
        %837 = vmatprep.subr.mxu0 0.0
        %838 = vmatpush1.msra.mxu0 %v720
        %839 = vmatprep.subr.mxu0 0.0
        %840 = vmatpush1.msra.mxu0 %v721
        %841 = vmatprep.subr.mxu0 0.0
        %842 = vmatpush1.msra.mxu0 %v722
        %843 = vmatprep.subr.mxu0 0.0
        %844 = vmatpush1.msra.mxu0 %v723
        %845 = vmatprep.subr.mxu0 0.0
        %846 = vmatpush1.msra.mxu0 %v724
        %847 = vmatprep.subr.mxu0 0.0
        %848 = vmatpush1.msra.mxu0 %v725
        %849 = vmatprep.subr.mxu0 0.0
        %850 = vmatpush1.msra.mxu0 %v726
        %851 = vmatprep.subr.mxu0 0.0
        %852 = vmatpush1.msra.mxu0 %v727
        %853 = vmatprep.subr.mxu0 0.0
        %854 = vmatpush1.msra.mxu0 0.0
        %855 = vmatprep.subr.mxu0 0.0
        %856 = vmatpush1.msra.mxu0 0.0
        %857 = vmatprep.subr.mxu0 0.0
        %858 = vmatpush1.msra.mxu0 0.0
        %859 = vmatprep.subr.mxu0 0.0
        %860 = vmatpush1.msra.mxu0 0.0
        %861 = vmatprep.subr.mxu0 0.0
        %862 = vmatpush1.msra.mxu0 0.0
        %863 = vmatprep.subr.mxu0 0.0
        %864 = vmatpush1.msra.mxu0 0.0
        %865 = vmatprep.subr.mxu0 0.0
        %866 = vmatpush1.msra.mxu0 0.0
        %867 = vmatprep.subr.mxu0 0.0
        %868 = vmatpush1.msra.mxu0 0.0
        %869 = vmatprep.subr.mxu0 0.0
        %870 = vmatpush1.msra.mxu0 0.0
        %871 = vmatprep.subr.mxu0 0.0
        %872 = vmatpush1.msra.mxu0 0.0
        %873 = vmatprep.subr.mxu0 0.0
        %874 = vmatpush1.msra.mxu0 0.0
        %875 = vmatprep.subr.mxu0 0.0
        %876 = vmatpush1.msra.mxu0 0.0
        %877 = vmatprep.subr.mxu0 0.0
        %878 = vmatpush1.msra.mxu0 0.0
        %879 = vmatprep.subr.mxu0 0.0
        %880 = vmatpush1.msra.mxu0 0.0
        %881 = vmatprep.subr.mxu0 0.0
        %882 = vmatpush1.msra.mxu0 0.0
        %883 = vmatprep.subr.mxu0 0.0
        %884 = vmatpush1.msra.mxu0 0.0
        %885 = vmatprep.mubr.f32.mxu0 0.0
        %886 = vmatmul.mubr.f32.gmra.mrb[0].mxu0 %v677
        %v887 = vpop.f32.mrb[0].mxu0
        %v888 = vadd.f32 %v803, %v887
        %v889 = vpop.f32.mrb[0].mxu0
        %890 = vmatprep.mubr.f32.mxu0 0.0
        %891 = vmatmul.mubr.f32.gmra.mrb[0].mxu0 %v676
        %v892 = vpop.f32.mrb[0].mxu0
        %v893 = vadd.f32 %v808, %v892
        %v894 = vpop.f32.mrb[0].mxu0
        %895 = vmatprep.mubr.f32.mxu0 0.0
        %896 = vmatmul.mubr.f32.gmra.mrb[0].mxu0 %v675
        %v897 = vpop.f32.mrb[0].mxu0
        %v898 = vadd.f32 %v813, %v897
        %v899 = vpop.f32.mrb[0].mxu0
        %900 = vmatprep.mubr.f32.mxu0 0.0
        %901 = vmatmul.mubr.f32.gmra.mrb[0].mxu0 %v678
        %v902 = vpop.f32.mrb[0].mxu0
        %v903 = vadd.f32 %v818, %v902
        %v904 = vpop.f32.mrb[0].mxu0
        %905 = vdwg.mxu0
        %v906 = vmax.f32 %v888, 0.0
        %v907 = vmax.f32 %v893, 0.0
        %v908 = vmax.f32 %v898, 0.0
        %v909 = vmax.f32 %v903, 0.0
        %s910 = scalar_lea.vmem [#allocation7], 128
        %v911 = vld [vmem:[%s910] sm:$0xff]
        %v912 = vld [vmem:[%s910 + $0x8] sm:$0xff]
        %v913 = vld [vmem:[%s910 + $0x10] sm:$0xff]
        %v914 = vld [vmem:[%s910 + $0x18] sm:$0xff]
        %v915 = vld [vmem:[%s910 + $0x20] sm:$0xff]
        %v916 = vld [vmem:[%s910 + $0x28] sm:$0xff]
        %v917 = vld [vmem:[%s910 + $0x30] sm:$0xff]
        %v918 = vld [vmem:[%s910 + $0x38] sm:$0xff]
        %v919 = vld [vmem:[%s910 + $0x40] sm:$0xff]
        %v920 = vld [vmem:[%s910 + $0x48] sm:$0xff]
        %v921 = vld [vmem:[%s910 + $0x50] sm:$0xff]
        %v922 = vld [vmem:[%s910 + $0x58] sm:$0xff]
        %v923 = vld [vmem:[%s910 + $0x60] sm:$0xff]
        %v924 = vld [vmem:[%s910 + $0x68] sm:$0xff]
        %v925 = vld [vmem:[%s910 + $0x70] sm:$0xff]
        %v926 = vld [vmem:[%s910 + $0x78] sm:$0xff]
        %s927 = scalar_lea.vmem %s4, 1
        %v928 = vld [vmem:[%s927] sm:$0x1]
        %v930 = vlaneseq
        %v931 = vshrl.u32 %v930, 7
        %v932 = vsub.s32 0, %v931
        %v933 = vrot.slane %v928, %v932
        %935 = vmatprep.subr.mxu0 0.0
        %936 = vmatpush1.msra.mxu0 %v911
        %937 = vmatprep.subr.mxu0 0.0
        %938 = vmatpush1.msra.mxu0 %v912
        %939 = vmatprep.subr.mxu0 0.0
        %940 = vmatpush1.msra.mxu0 %v913
        %941 = vmatprep.subr.mxu0 0.0
        %942 = vmatpush1.msra.mxu0 %v914
        %943 = vmatprep.subr.mxu0 0.0
        %944 = vmatpush1.msra.mxu0 %v915
        %945 = vmatprep.subr.mxu0 0.0
        %946 = vmatpush1.msra.mxu0 %v916
        %947 = vmatprep.subr.mxu0 0.0
        %948 = vmatpush1.msra.mxu0 %v917
        %949 = vmatprep.subr.mxu0 0.0
        %950 = vmatpush1.msra.mxu0 %v918
        %951 = vmatprep.subr.mxu0 0.0
        %952 = vmatpush1.msra.mxu0 %v919
        %953 = vmatprep.subr.mxu0 0.0
        %954 = vmatpush1.msra.mxu0 %v920
        %955 = vmatprep.subr.mxu0 0.0
        %956 = vmatpush1.msra.mxu0 %v921
        %957 = vmatprep.subr.mxu0 0.0
        %958 = vmatpush1.msra.mxu0 %v922
        %959 = vmatprep.subr.mxu0 0.0
        %960 = vmatpush1.msra.mxu0 %v923
        %961 = vmatprep.subr.mxu0 0.0
        %962 = vmatpush1.msra.mxu0 %v924
        %963 = vmatprep.subr.mxu0 0.0
        %964 = vmatpush1.msra.mxu0 %v925
        %965 = vmatprep.subr.mxu0 0.0
        %966 = vmatpush1.msra.mxu0 %v926
        %967 = vmatprep.subr.mxu0 0.0
        %968 = vmatpush1.msra.mxu0 0.0
        %969 = vmatprep.subr.mxu0 0.0
        %970 = vmatpush1.msra.mxu0 0.0
        %971 = vmatprep.subr.mxu0 0.0
        %972 = vmatpush1.msra.mxu0 0.0
        %973 = vmatprep.subr.mxu0 0.0
        %974 = vmatpush1.msra.mxu0 0.0
        %975 = vmatprep.subr.mxu0 0.0
        %976 = vmatpush1.msra.mxu0 0.0
        %977 = vmatprep.subr.mxu0 0.0
        %978 = vmatpush1.msra.mxu0 0.0
        %979 = vmatprep.subr.mxu0 0.0
        %980 = vmatpush1.msra.mxu0 0.0
        %981 = vmatprep.subr.mxu0 0.0
        %982 = vmatpush1.msra.mxu0 0.0
        %983 = vmatprep.subr.mxu0 0.0
        %984 = vmatpush1.msra.mxu0 0.0
        %985 = vmatprep.subr.mxu0 0.0
        %986 = vmatpush1.msra.mxu0 0.0
        %987 = vmatprep.subr.mxu0 0.0
        %988 = vmatpush1.msra.mxu0 0.0
        %989 = vmatprep.subr.mxu0 0.0
        %990 = vmatpush1.msra.mxu0 0.0
        %991 = vmatprep.subr.mxu0 0.0
        %992 = vmatpush1.msra.mxu0 0.0
        %993 = vmatprep.subr.mxu0 0.0
        %994 = vmatpush1.msra.mxu0 0.0
        %995 = vmatprep.subr.mxu0 0.0
        %996 = vmatpush1.msra.mxu0 0.0
        %997 = vmatprep.subr.mxu0 0.0
        %998 = vmatpush1.msra.mxu0 0.0
        %999 = vmatprep.mubr.f32.mxu0 0.0
        %1000 = vmatmul.mubr.f32.gmra.mrb[0].mxu0 %v906
        %v1001 = vpop.f32.mrb[0].mxu0
        %v1002 = vadd.f32 %v933, %v1001
        %v1003 = vpop.f32.mrb[0].mxu0
        %1004 = vmatprep.mubr.f32.mxu0 0.0
        %1005 = vmatmul.mubr.f32.gmra.mrb[0].mxu0 %v907
        %v1006 = vpop.f32.mrb[0].mxu0
        %v1007 = vadd.f32 %v933, %v1006
        %v1008 = vpop.f32.mrb[0].mxu0
        %1009 = vmatprep.mubr.f32.mxu0 0.0
        %1010 = vmatmul.mubr.f32.gmra.mrb[0].mxu0 %v908
        %v1011 = vpop.f32.mrb[0].mxu0
        %v1012 = vadd.f32 %v933, %v1011
        %v1013 = vpop.f32.mrb[0].mxu0
        %1014 = vmatprep.mubr.f32.mxu0 0.0
        %1015 = vmatmul.mubr.f32.gmra.mrb[0].mxu0 %v909
        %v1016 = vpop.f32.mrb[0].mxu0
        %v1017 = vadd.f32 %v933, %v1016
        %v1018 = vpop.f32.mrb[0].mxu0
        %1019 = vdwg.mxu0
        %v1020 = vsel %vm286, %v1002, 0.0
        %v1021 = vsel %vm287, %v1007, 0.0
        %v1022 = vsel %vm288, %v1012, 0.0
        %v1023 = vsel %vm289, %v1017, 0.0
        %v1024 = vadd.f32 %v653, %v1020
        %v1025 = vadd.f32 %v654, %v1021
        %v1026 = vadd.f32 %v655, %v1022
        %v1027 = vadd.f32 %v656, %v1023
        %v1028 = vmax.f32 %v1024, 0.0
        %v1029 = vmax.f32 %v1025, 0.0
        %v1030 = vmax.f32 %v1026, 0.0
        %v1031 = vmax.f32 %v1027, 0.0
        %v1032 = vrot.slane %v1028, 4
        %v1033 = vrot.slane %v1029, 4
        %v1034 = vrot.slane %v1030, 4
        %v1035 = vrot.slane %v1031, 4
        %vm1036 = vcmp.lt.s32.totalorder %v267, 4
        %v1037 = vsel %vm1036, %v1034, %v1035
        %v1038 = vsel %vm1036, %v1033, %v1034
        %v1039 = vsel %vm1036, %v1032, %v1033
        %v1040 = vsel %vm1036, %v1035, %v1032
        %s1041 = scalar_lea.vmem [#allocation4], 768
        %v1042 = vld [vmem:[%s1041] sm:$0xff]
        %v1043 = vld [vmem:[%s1041 + $0x8] sm:$0xff]
        %v1044 = vld [vmem:[%s1041 + $0x10] sm:$0xff]
        %v1045 = vld [vmem:[%s1041 + $0x18] sm:$0xff]
        %v1046 = vld [vmem:[%s1041 + $0x20] sm:$0xff]
        %v1047 = vld [vmem:[%s1041 + $0x28] sm:$0xff]
        %v1048 = vld [vmem:[%s1041 + $0x30] sm:$0xff]
        %v1049 = vld [vmem:[%s1041 + $0x38] sm:$0xff]
        %v1050 = vld [vmem:[%s1041 + $0x40] sm:$0xff]
        %v1051 = vld [vmem:[%s1041 + $0x48] sm:$0xff]
        %v1052 = vld [vmem:[%s1041 + $0x50] sm:$0xff]
        %v1053 = vld [vmem:[%s1041 + $0x58] sm:$0xff]
        %v1054 = vld [vmem:[%s1041 + $0x60] sm:$0xff]
        %v1055 = vld [vmem:[%s1041 + $0x68] sm:$0xff]
        %v1056 = vld [vmem:[%s1041 + $0x70] sm:$0xff]
        %v1057 = vld [vmem:[%s1041 + $0x78] sm:$0xff]
        %v1058 = vld [vmem:[%s1041 + $0x80] sm:$0xff]
        %v1059 = vld [vmem:[%s1041 + $0x88] sm:$0xff]
        %v1060 = vld [vmem:[%s1041 + $0x90] sm:$0xff]
        %v1061 = vld [vmem:[%s1041 + $0x98] sm:$0xff]
        %v1062 = vld [vmem:[%s1041 + $0xa0] sm:$0xff]
        %v1063 = vld [vmem:[%s1041 + $0xa8] sm:$0xff]
        %v1064 = vld [vmem:[%s1041 + $0xb0] sm:$0xff]
        %v1065 = vld [vmem:[%s1041 + $0xb8] sm:$0xff]
        %v1066 = vld [vmem:[%s1041 + $0xc0] sm:$0xff]
        %v1067 = vld [vmem:[%s1041 + $0xc8] sm:$0xff]
        %v1068 = vld [vmem:[%s1041 + $0xd0] sm:$0xff]
        %v1069 = vld [vmem:[%s1041 + $0xd8] sm:$0xff]
        %v1070 = vld [vmem:[%s1041 + $0xe0] sm:$0xff]
        %v1071 = vld [vmem:[%s1041 + $0xe8] sm:$0xff]
        %v1072 = vld [vmem:[%s1041 + $0xf0] sm:$0xff]
        %v1073 = vld [vmem:[%s1041 + $0xf8] sm:$0xff]
        %v1074 = vld [vmem:[%s1041 + $0x100] sm:$0xff]
        %v1075 = vld [vmem:[%s1041 + $0x108] sm:$0xff]
        %v1076 = vld [vmem:[%s1041 + $0x110] sm:$0xff]
        %v1077 = vld [vmem:[%s1041 + $0x118] sm:$0xff]
        %v1078 = vld [vmem:[%s1041 + $0x120] sm:$0xff]
        %v1079 = vld [vmem:[%s1041 + $0x128] sm:$0xff]
        %v1080 = vld [vmem:[%s1041 + $0x130] sm:$0xff]
        %v1081 = vld [vmem:[%s1041 + $0x138] sm:$0xff]
        %v1082 = vld [vmem:[%s1041 + $0x140] sm:$0xff]
        %v1083 = vld [vmem:[%s1041 + $0x148] sm:$0xff]
        %v1084 = vld [vmem:[%s1041 + $0x150] sm:$0xff]
        %v1085 = vld [vmem:[%s1041 + $0x158] sm:$0xff]
        %v1086 = vld [vmem:[%s1041 + $0x160] sm:$0xff]
        %v1087 = vld [vmem:[%s1041 + $0x168] sm:$0xff]
        %v1088 = vld [vmem:[%s1041 + $0x170] sm:$0xff]
        %v1089 = vld [vmem:[%s1041 + $0x178] sm:$0xff]
        %s1090 = scalar_lea.vmem %s2, 2
        %v1091 = vld [vmem:[%s1090] sm:$0x1]
        %v1093 = vlaneseq
        %v1094 = vshrl.u32 %v1093, 7
        %v1095 = vsub.s32 0, %v1094
        %v1096 = vrot.slane %v1091, %v1095
        %1098 = vmatprep.subr.mxu0 0.0
        %1099 = vmatpush1.msra.mxu0 %v1042
        %1100 = vmatprep.subr.mxu0 0.0
        %1101 = vmatpush1.msra.mxu0 %v1043
        %1102 = vmatprep.subr.mxu0 0.0
        %1103 = vmatpush1.msra.mxu0 %v1044
        %1104 = vmatprep.subr.mxu0 0.0
        %1105 = vmatpush1.msra.mxu0 %v1045
        %1106 = vmatprep.subr.mxu0 0.0
        %1107 = vmatpush1.msra.mxu0 %v1046
        %1108 = vmatprep.subr.mxu0 0.0
        %1109 = vmatpush1.msra.mxu0 %v1047
        %1110 = vmatprep.subr.mxu0 0.0
        %1111 = vmatpush1.msra.mxu0 %v1048
        %1112 = vmatprep.subr.mxu0 0.0
        %1113 = vmatpush1.msra.mxu0 %v1049
        %1114 = vmatprep.subr.mxu0 0.0
        %1115 = vmatpush1.msra.mxu0 %v1050
        %1116 = vmatprep.subr.mxu0 0.0
        %1117 = vmatpush1.msra.mxu0 %v1051
        %1118 = vmatprep.subr.mxu0 0.0
        %1119 = vmatpush1.msra.mxu0 %v1052
        %1120 = vmatprep.subr.mxu0 0.0
        %1121 = vmatpush1.msra.mxu0 %v1053
        %1122 = vmatprep.subr.mxu0 0.0
        %1123 = vmatpush1.msra.mxu0 %v1054
        %1124 = vmatprep.subr.mxu0 0.0
        %1125 = vmatpush1.msra.mxu0 %v1055
        %1126 = vmatprep.subr.mxu0 0.0
        %1127 = vmatpush1.msra.mxu0 %v1056
        %1128 = vmatprep.subr.mxu0 0.0
        %1129 = vmatpush1.msra.mxu0 %v1057
        %1130 = vmatprep.subr.mxu0 0.0
        %1131 = vmatpush1.msra.mxu0 %v1058
        %1132 = vmatprep.subr.mxu0 0.0
        %1133 = vmatpush1.msra.mxu0 %v1059
        %1134 = vmatprep.subr.mxu0 0.0
        %1135 = vmatpush1.msra.mxu0 %v1060
        %1136 = vmatprep.subr.mxu0 0.0
        %1137 = vmatpush1.msra.mxu0 %v1061
        %1138 = vmatprep.subr.mxu0 0.0
        %1139 = vmatpush1.msra.mxu0 %v1062
        %1140 = vmatprep.subr.mxu0 0.0
        %1141 = vmatpush1.msra.mxu0 %v1063
        %1142 = vmatprep.subr.mxu0 0.0
        %1143 = vmatpush1.msra.mxu0 %v1064
        %1144 = vmatprep.subr.mxu0 0.0
        %1145 = vmatpush1.msra.mxu0 %v1065
        %1146 = vmatprep.subr.mxu0 0.0
        %1147 = vmatpush1.msra.mxu0 %v1066
        %1148 = vmatprep.subr.mxu0 0.0
        %1149 = vmatpush1.msra.mxu0 %v1067
        %1150 = vmatprep.subr.mxu0 0.0
        %1151 = vmatpush1.msra.mxu0 %v1068
        %1152 = vmatprep.subr.mxu0 0.0
        %1153 = vmatpush1.msra.mxu0 %v1069
        %1154 = vmatprep.subr.mxu0 0.0
        %1155 = vmatpush1.msra.mxu0 %v1070
        %1156 = vmatprep.subr.mxu0 0.0
        %1157 = vmatpush1.msra.mxu0 %v1071
        %1158 = vmatprep.subr.mxu0 0.0
        %1159 = vmatpush1.msra.mxu0 %v1072
        %1160 = vmatprep.subr.mxu0 0.0
        %1161 = vmatpush1.msra.mxu0 %v1073
        %1162 = vmatprep.mubr.f32.mxu0 %v1028
        %1163 = vmatmul.mubr.f32.gmra.mrb[0].mxu0 %v1040
        %v1164 = vpop.f32.mrb[0].mxu0
        %v1165 = vadd.f32 %v1096, %v1164
        %v1166 = vpop.f32.mrb[0].mxu0
        %1167 = vmatprep.mubr.f32.mxu0 %v1029
        %1168 = vmatmul.mubr.f32.gmra.mrb[0].mxu0 %v1039
        %v1169 = vpop.f32.mrb[0].mxu0
        %v1170 = vadd.f32 %v1096, %v1169
        %v1171 = vpop.f32.mrb[0].mxu0
        %1172 = vmatprep.mubr.f32.mxu0 %v1030
        %1173 = vmatmul.mubr.f32.gmra.mrb[0].mxu0 %v1038
        %v1174 = vpop.f32.mrb[0].mxu0
        %v1175 = vadd.f32 %v1096, %v1174
        %v1176 = vpop.f32.mrb[0].mxu0
        %1177 = vmatprep.mubr.f32.mxu0 %v1031
        %1178 = vmatmul.mubr.f32.gmra.mrb[0].mxu0 %v1037
        %v1179 = vpop.f32.mrb[0].mxu0
        %v1180 = vadd.f32 %v1096, %v1179
        %v1181 = vpop.f32.mrb[0].mxu0
        %1182 = vdwg.mxu0
        %1183 = vmatprep.subr.mxu0 0.0
        %1184 = vmatpush1.msra.mxu0 %v1074
        %1185 = vmatprep.subr.mxu0 0.0
        %1186 = vmatpush1.msra.mxu0 %v1075
        %1187 = vmatprep.subr.mxu0 0.0
        %1188 = vmatpush1.msra.mxu0 %v1076
        %1189 = vmatprep.subr.mxu0 0.0
        %1190 = vmatpush1.msra.mxu0 %v1077
        %1191 = vmatprep.subr.mxu0 0.0
        %1192 = vmatpush1.msra.mxu0 %v1078
        %1193 = vmatprep.subr.mxu0 0.0
        %1194 = vmatpush1.msra.mxu0 %v1079
        %1195 = vmatprep.subr.mxu0 0.0
        %1196 = vmatpush1.msra.mxu0 %v1080
        %1197 = vmatprep.subr.mxu0 0.0
        %1198 = vmatpush1.msra.mxu0 %v1081
        %1199 = vmatprep.subr.mxu0 0.0
        %1200 = vmatpush1.msra.mxu0 %v1082
        %1201 = vmatprep.subr.mxu0 0.0
        %1202 = vmatpush1.msra.mxu0 %v1083
        %1203 = vmatprep.subr.mxu0 0.0
        %1204 = vmatpush1.msra.mxu0 %v1084
        %1205 = vmatprep.subr.mxu0 0.0
        %1206 = vmatpush1.msra.mxu0 %v1085
        %1207 = vmatprep.subr.mxu0 0.0
        %1208 = vmatpush1.msra.mxu0 %v1086
        %1209 = vmatprep.subr.mxu0 0.0
        %1210 = vmatpush1.msra.mxu0 %v1087
        %1211 = vmatprep.subr.mxu0 0.0
        %1212 = vmatpush1.msra.mxu0 %v1088
        %1213 = vmatprep.subr.mxu0 0.0
        %1214 = vmatpush1.msra.mxu0 %v1089
        %1215 = vmatprep.subr.mxu0 0.0
        %1216 = vmatpush1.msra.mxu0 0.0
        %1217 = vmatprep.subr.mxu0 0.0
        %1218 = vmatpush1.msra.mxu0 0.0
        %1219 = vmatprep.subr.mxu0 0.0
        %1220 = vmatpush1.msra.mxu0 0.0
        %1221 = vmatprep.subr.mxu0 0.0
        %1222 = vmatpush1.msra.mxu0 0.0
        %1223 = vmatprep.subr.mxu0 0.0
        %1224 = vmatpush1.msra.mxu0 0.0
        %1225 = vmatprep.subr.mxu0 0.0
        %1226 = vmatpush1.msra.mxu0 0.0
        %1227 = vmatprep.subr.mxu0 0.0
        %1228 = vmatpush1.msra.mxu0 0.0
        %1229 = vmatprep.subr.mxu0 0.0
        %1230 = vmatpush1.msra.mxu0 0.0
        %1231 = vmatprep.subr.mxu0 0.0
        %1232 = vmatpush1.msra.mxu0 0.0
        %1233 = vmatprep.subr.mxu0 0.0
        %1234 = vmatpush1.msra.mxu0 0.0
        %1235 = vmatprep.subr.mxu0 0.0
        %1236 = vmatpush1.msra.mxu0 0.0
        %1237 = vmatprep.subr.mxu0 0.0
        %1238 = vmatpush1.msra.mxu0 0.0
        %1239 = vmatprep.subr.mxu0 0.0
        %1240 = vmatpush1.msra.mxu0 0.0
        %1241 = vmatprep.subr.mxu0 0.0
        %1242 = vmatpush1.msra.mxu0 0.0
        %1243 = vmatprep.subr.mxu0 0.0
        %1244 = vmatpush1.msra.mxu0 0.0
        %1245 = vmatprep.subr.mxu0 0.0
        %1246 = vmatpush1.msra.mxu0 0.0
        %1247 = vmatprep.mubr.f32.mxu0 0.0
        %1248 = vmatmul.mubr.f32.gmra.mrb[0].mxu0 %v1039
        %v1249 = vpop.f32.mrb[0].mxu0
        %v1250 = vadd.f32 %v1165, %v1249
        %v1251 = vpop.f32.mrb[0].mxu0
        %1252 = vmatprep.mubr.f32.mxu0 0.0
        %1253 = vmatmul.mubr.f32.gmra.mrb[0].mxu0 %v1038
        %v1254 = vpop.f32.mrb[0].mxu0
        %v1255 = vadd.f32 %v1170, %v1254
        %v1256 = vpop.f32.mrb[0].mxu0
        %1257 = vmatprep.mubr.f32.mxu0 0.0
        %1258 = vmatmul.mubr.f32.gmra.mrb[0].mxu0 %v1037
        %v1259 = vpop.f32.mrb[0].mxu0
        %v1260 = vadd.f32 %v1175, %v1259
        %v1261 = vpop.f32.mrb[0].mxu0
        %1262 = vmatprep.mubr.f32.mxu0 0.0
        %1263 = vmatmul.mubr.f32.gmra.mrb[0].mxu0 %v1040
        %v1264 = vpop.f32.mrb[0].mxu0
        %v1265 = vadd.f32 %v1180, %v1264
        %v1266 = vpop.f32.mrb[0].mxu0
        %1267 = vdwg.mxu0
        %v1268 = vmax.f32 %v1250, 0.0
        %v1269 = vmax.f32 %v1255, 0.0
        %v1270 = vmax.f32 %v1260, 0.0
        %v1271 = vmax.f32 %v1265, 0.0
        %s1272 = scalar_lea.vmem [#allocation7], 256
        %v1273 = vld [vmem:[%s1272] sm:$0xff]
        %v1274 = vld [vmem:[%s1272 + $0x8] sm:$0xff]
        %v1275 = vld [vmem:[%s1272 + $0x10] sm:$0xff]
        %v1276 = vld [vmem:[%s1272 + $0x18] sm:$0xff]
        %v1277 = vld [vmem:[%s1272 + $0x20] sm:$0xff]
        %v1278 = vld [vmem:[%s1272 + $0x28] sm:$0xff]
        %v1279 = vld [vmem:[%s1272 + $0x30] sm:$0xff]
        %v1280 = vld [vmem:[%s1272 + $0x38] sm:$0xff]
        %v1281 = vld [vmem:[%s1272 + $0x40] sm:$0xff]
        %v1282 = vld [vmem:[%s1272 + $0x48] sm:$0xff]
        %v1283 = vld [vmem:[%s1272 + $0x50] sm:$0xff]
        %v1284 = vld [vmem:[%s1272 + $0x58] sm:$0xff]
        %v1285 = vld [vmem:[%s1272 + $0x60] sm:$0xff]
        %v1286 = vld [vmem:[%s1272 + $0x68] sm:$0xff]
        %v1287 = vld [vmem:[%s1272 + $0x70] sm:$0xff]
        %v1288 = vld [vmem:[%s1272 + $0x78] sm:$0xff]
        %s1289 = scalar_lea.vmem %s4, 2
        %v1290 = vld [vmem:[%s1289] sm:$0x1]
        %v1292 = vlaneseq
        %v1293 = vshrl.u32 %v1292, 7
        %v1294 = vsub.s32 0, %v1293
        %v1295 = vrot.slane %v1290, %v1294
        %1297 = vmatprep.subr.mxu0 0.0
        %1298 = vmatpush1.msra.mxu0 %v1273
        %1299 = vmatprep.subr.mxu0 0.0
        %1300 = vmatpush1.msra.mxu0 %v1274
        %1301 = vmatprep.subr.mxu0 0.0
        %1302 = vmatpush1.msra.mxu0 %v1275
        %1303 = vmatprep.subr.mxu0 0.0
        %1304 = vmatpush1.msra.mxu0 %v1276
        %1305 = vmatprep.subr.mxu0 0.0
        %1306 = vmatpush1.msra.mxu0 %v1277
        %1307 = vmatprep.subr.mxu0 0.0
        %1308 = vmatpush1.msra.mxu0 %v1278
        %1309 = vmatprep.subr.mxu0 0.0
        %1310 = vmatpush1.msra.mxu0 %v1279
        %1311 = vmatprep.subr.mxu0 0.0
        %1312 = vmatpush1.msra.mxu0 %v1280
        %1313 = vmatprep.subr.mxu0 0.0
        %1314 = vmatpush1.msra.mxu0 %v1281
        %1315 = vmatprep.subr.mxu0 0.0
        %1316 = vmatpush1.msra.mxu0 %v1282
        %1317 = vmatprep.subr.mxu0 0.0
        %1318 = vmatpush1.msra.mxu0 %v1283
        %1319 = vmatprep.subr.mxu0 0.0
        %1320 = vmatpush1.msra.mxu0 %v1284
        %1321 = vmatprep.subr.mxu0 0.0
        %1322 = vmatpush1.msra.mxu0 %v1285
        %1323 = vmatprep.subr.mxu0 0.0
        %1324 = vmatpush1.msra.mxu0 %v1286
        %1325 = vmatprep.subr.mxu0 0.0
        %1326 = vmatpush1.msra.mxu0 %v1287
        %1327 = vmatprep.subr.mxu0 0.0
        %1328 = vmatpush1.msra.mxu0 %v1288
        %1329 = vmatprep.subr.mxu0 0.0
        %1330 = vmatpush1.msra.mxu0 0.0
        %1331 = vmatprep.subr.mxu0 0.0
        %1332 = vmatpush1.msra.mxu0 0.0
        %1333 = vmatprep.subr.mxu0 0.0
        %1334 = vmatpush1.msra.mxu0 0.0
        %1335 = vmatprep.subr.mxu0 0.0
        %1336 = vmatpush1.msra.mxu0 0.0
        %1337 = vmatprep.subr.mxu0 0.0
        %1338 = vmatpush1.msra.mxu0 0.0
        %1339 = vmatprep.subr.mxu0 0.0
        %1340 = vmatpush1.msra.mxu0 0.0
        %1341 = vmatprep.subr.mxu0 0.0
        %1342 = vmatpush1.msra.mxu0 0.0
        %1343 = vmatprep.subr.mxu0 0.0
        %1344 = vmatpush1.msra.mxu0 0.0
        %1345 = vmatprep.subr.mxu0 0.0
        %1346 = vmatpush1.msra.mxu0 0.0
        %1347 = vmatprep.subr.mxu0 0.0
        %1348 = vmatpush1.msra.mxu0 0.0
        %1349 = vmatprep.subr.mxu0 0.0
        %1350 = vmatpush1.msra.mxu0 0.0
        %1351 = vmatprep.subr.mxu0 0.0
        %1352 = vmatpush1.msra.mxu0 0.0
        %1353 = vmatprep.subr.mxu0 0.0
        %1354 = vmatpush1.msra.mxu0 0.0
        %1355 = vmatprep.subr.mxu0 0.0
        %1356 = vmatpush1.msra.mxu0 0.0
        %1357 = vmatprep.subr.mxu0 0.0
        %1358 = vmatpush1.msra.mxu0 0.0
        %1359 = vmatprep.subr.mxu0 0.0
        %1360 = vmatpush1.msra.mxu0 0.0
        %1361 = vmatprep.mubr.f32.mxu0 0.0
        %1362 = vmatmul.mubr.f32.gmra.mrb[0].mxu0 %v1268
        %v1363 = vpop.f32.mrb[0].mxu0
        %v1364 = vpop.f32.mrb[0].mxu0
        %1365 = vmatprep.mubr.f32.mxu0 0.0
        %1366 = vmatmul.mubr.f32.gmra.mrb[0].mxu0 %v1269
        %v1367 = vpop.f32.mrb[0].mxu0
        %v1368 = vadd.f32 %v1295, %v1367
        %v1369 = vpop.f32.mrb[0].mxu0
        %1370 = vmatprep.mubr.f32.mxu0 0.0
        %1371 = vmatmul.mubr.f32.gmra.mrb[0].mxu0 %v1270
        %v1372 = vpop.f32.mrb[0].mxu0
        %v1373 = vadd.f32 %v1295, %v1372
        %v1374 = vpop.f32.mrb[0].mxu0
        %1375 = vmatprep.mubr.f32.mxu0 0.0
        %1376 = vmatmul.mubr.f32.gmra.mrb[0].mxu0 %v1271
        %v1377 = vpop.f32.mrb[0].mxu0
        %v1378 = vpop.f32.mrb[0].mxu0
        %1379 = vdwg.mxu0
        %v1380 = vsel %vm287, %v1368, 0.0
        %v1381 = vsel %vm288, %v1373, 0.0
        %v1382 = vadd.f32 %v1025, %v1380
        %v1383 = vadd.f32 %v1026, %v1381
        %1384 = vst [vmem:[%s220] sm:$0xff] %v1382
        %1385 = vst [vmem:[%s220 + $0x8] sm:$0xff] %v1383
        %s1386 = sand.u32 %s127, 1
        %s1387 = scalar_lea.sflag [#allocation6], %s1386
        %s1388 = sand.u32 %s127, 1
        %s1389 = smul.addr %s1388, 16
        %s1390 = scalar_lea.vmem [#allocation9], %s1389
        // Predicated region
        $region53: #{tpu_custom_call.1} parent=35 // pred_check
          %p1391 = pneg %p137
        $region54: #{tpu_custom_call.1} parent=35 // pred_check_branch
          %1393 = sbr.rel (%p1391) target = $region56
        $region55: #{tpu_custom_call.1} parent=35 // pred_region
          %s1394 = smul.u32 2, %s26
          %s1396 = ssub.s32 256, 256
          %1397 = vsyncadd %s1387, %s1396
          %s1398 = smul.addr %s25, 2
          %s1399 = sadd.s32 %s1394, %s1398
          %s1400 = smul.addr %s1399, 128
          %s1401 = scalar_lea.hbm %s5, %s1400
          %s1402 = sshll.u32 %s1390, 4
          %s1403 = int_to_ptr.vmem [resolvable:$true] %s1402
          %1408 = dma.vmem_to_hbm [thread:$0]  %s1403, 256, %s1401, %s1387, 128, 128, 8
        $region56: #{tpu_custom_call.1} parent=35 // pred_fallthru
          _
      $region36: #{tpu_custom_call.1} parent=5 // pred_fallthru
        _
      %p1409 = scmp.le.s32.totalorder 2, %s16
      // Predicated region
      $region57: #{tpu_custom_call.1} parent=5 // pred_check
        %p1410 = pneg %p1409
      $region58: #{tpu_custom_call.1} parent=5 // pred_check_branch
        %1412 = sbr.rel (%p1410) target = $region60
      $region59: #{tpu_custom_call.1} parent=5 // pred_region
        %s1413 = ssub.s32 %s16, 2
        // Predicated region
        $region61: #{tpu_custom_call.1} parent=59 // pred_check
          %p1414 = pneg %p143
        $region62: #{tpu_custom_call.1} parent=59 // pred_check_branch
          %1416 = sbr.rel (%p1414) target = $region64
        $region63: #{tpu_custom_call.1} parent=59 // pred_region
          %s1417 = sand.u32 %s128, 1
          %s1418 = scalar_lea.sflag [#allocation6], %s1417
          %s1419 = sand.u32 %s128, 1
          %s1420 = smul.addr %s1419, 16
          %s1421 = scalar_lea.vmem [#allocation9], %s1420
          %1422 = dma.done %s1418, 256
        $region64: #{tpu_custom_call.1} parent=59 // pred_fallthru
          _
      $region60: #{tpu_custom_call.1} parent=5 // pred_fallthru
        _
    $region6: #{tpu_custom_call.1} parent=1 // loop_footer
      %s20 = sadd.s32 1, %s16
    $region7: #{tpu_custom_call.1} parent=1 // loop_footer_branch
      %15 = sbr.rel target = $region3
    $region8: #{tpu_custom_call.1} parent=1 // loop_exit
      _
    %1423 = vsyncpa [#allocation5], 1
    %s1424 = scalar_lea.sflag [#allocation5], 1
    %1425 = vsyncpa %s1424, 1
    %1426 = vsyncpa [#allocation8], 1
    %1427 = vsyncpa [#allocation6], 1
    %s1428 = scalar_lea.sflag [#allocation6], 1
    %1429 = vsyncpa %s1428, 1
  %1430 = vsyncmov [#allocation3]
  %s1431 = vpop.sfrf %1430
  %p1432 = scmp.eq.s32.totalorder %s1431, 0
  %p1433 = pneg %p1432
  %1435 = shalt.err (%p1433)
  %s1436 = scalar_lea.sflag [#allocation3], 1
  %1437 = vsyncmov %s1436
  %s1438 = vpop.sfrf %1437
  %p1439 = scmp.eq.s32.totalorder %s1438, 0
  %p1440 = pneg %p1439
  %1442 = shalt.err (%p1440)

</llo_original>
